<compile_context>
chip_gen: v7x
topology: tpu7x:2x2x1
jax: 0.10.0
libtpu: 0.0.40
codegen_flags: <defaults>
</compile_context>

<pallas_src>
import jax
import jax.numpy as jnp
from jax.experimental import pallas as pl
from jax.experimental.pallas import tpu as pltpu


HPAD = 128  # hidden dims padded up to one lane-dense width


def _round_up(x, m):
    return (x + m - 1) // m * m


def photo_predict_kernel(x_ref, w1_ref, b1_ref, w2_ref, b2_ref, w3_ref, b3_ref, o_ref):
    # x arrives as f32 straight from HBM; cast to bf16 on the VPU (free — the kernel is
    # mem-bound) instead of paying an extra host-side cast pass. The 1/255 scale is
    # already folded into W1.
    x = x_ref[...].astype(jnp.bfloat16)

    # h1 = relu(x @ W1 + b1)   (bf16 MXU matmul, f32 accumulate)
    h1 = jnp.dot(x, w1_ref[...], preferred_element_type=jnp.float32) + b1_ref[...]
    h1 = jnp.maximum(h1, 0.0)

    # h2 = relu(h1 @ W2 + b2)
    h2 = jnp.dot(h1.astype(jnp.bfloat16), w2_ref[...],
                 preferred_element_type=jnp.float32) + b2_ref[...]
    h2 = jnp.maximum(h2, 0.0)

    # y = 255 * sigmoid(h2 @ W3 + b3)   (elementwise math kept in f32)
    h3 = jnp.dot(h2.astype(jnp.bfloat16), w3_ref[...],
                 preferred_element_type=jnp.float32) + b3_ref[...]
    o_ref[...] = (255.0 * jax.nn.sigmoid(h3)).astype(o_ref.dtype)


def prepare_params(w1, b1, w2, b2, w3, b3, hpad=HPAD):
    """Host-side weight prep (done once):
      - fold the 1/255 input normalization into W1,
      - zero-pad hidden dims up to `hpad` lanes (padded biases = 0 so ReLU keeps them 0),
      - cast weights to bf16 for the MXU; biases stay f32.
    """
    in_dim, h1 = w1.shape
    h2 = w2.shape[1]
    out_dim = w3.shape[1]
    w1p = jnp.zeros((in_dim, hpad), jnp.float32).at[:, :h1].set(w1 / 255.0)
    b1p = jnp.zeros((1, hpad), jnp.float32).at[:, :h1].set(b1)
    w2p = jnp.zeros((hpad, hpad), jnp.float32).at[:h1, :h2].set(w2)
    b2p = jnp.zeros((1, hpad), jnp.float32).at[:, :h2].set(b2)
    w3p = jnp.zeros((hpad, out_dim), jnp.float32).at[:h2, :].set(w3)
    return (w1p.astype(jnp.bfloat16), b1p,
            w2p.astype(jnp.bfloat16), b2p,
            w3p.astype(jnp.bfloat16), b3)


def photo_predict(x, w1, b1, w2, b2, w3, b3, *, block_batch=512):
    """x: [batch, in_features] f32 pixel values in [0, 255].
    w1/w2/w3 bf16 [in,hp]/[hp,hp]/[hp,out], b1/b2/b3 f32 [1,*] (from prepare_params)."""
    batch, in_dim = x.shape
    out_dim = w3.shape[1]
    hp = w1.shape[1]

    # Batch tile: multiple of 8 sublanes; ragged last tile handled by the grid (no host pad).
    tb = min(block_batch, _round_up(batch, 8))
    num_blocks = pl.cdiv(batch, tb)

    # Weights/biases: constant index_map -> fetched once, stay resident in VMEM.
    def resident(a):
        return pl.BlockSpec(a.shape, lambda i: (0,) * a.ndim)

    cost = pl.CostEstimate(
        flops=2 * batch * (in_dim * hp + hp * hp + hp * out_dim),
        transcendentals=batch * out_dim,
        bytes_accessed=(x.size * 4 + batch * out_dim * 4
                        + (w1.size + w2.size + w3.size) * 2
                        + (b1.size + b2.size + b3.size) * 4),
    )

    out = pl.pallas_call(
        photo_predict_kernel,
        out_shape=jax.ShapeDtypeStruct((batch, out_dim), jnp.float32),
        grid_spec=pltpu.PrefetchScalarGridSpec(
            num_scalar_prefetch=0,
            grid=(num_blocks,),
            in_specs=[
                pl.BlockSpec((tb, in_dim), lambda i: (i, 0)),
                resident(w1), resident(b1),
                resident(w2), resident(b2),
                resident(w3), resident(b3),
            ],
            out_specs=pl.BlockSpec((tb, out_dim), lambda i: (i, 0)),
        ),
        compiler_params=pltpu.CompilerParams(
            # batch tiles are independent -> shard across TensorCores (v7x megacore)
            dimension_semantics=("parallel",),
        ),
        cost_estimate=cost,
    )(x, w1, b1, w2, b2, w3, b3)

    return out


def init_params(key, input_dimensions, output_dimensions):
    """Deterministic init mimicking nn.Linear's uniform(-1/sqrt(fan_in), +1/sqrt(fan_in)).
    Weights stored as [in, out] (transpose of PyTorch's [out, in])."""
    h1 = output_dimensions // 4
    h2 = output_dimensions // 8
    dims = [(input_dimensions, h1), (h1, h2), (h2, output_dimensions)]
    params = []
    for (fan_in, fan_out) in dims:
        key, kw, kb = jax.random.split(key, 3)
        bound = 1.0 / (fan_in ** 0.5)
        w = jax.random.uniform(kw, (fan_in, fan_out), jnp.float32, -bound, bound)
        b = jax.random.uniform(kb, (1, fan_out), jnp.float32, -bound, bound)
        params += [w, b]
    return params


def reference_forward_f32(x, w1, b1, w2, b2, w3, b3):
    """Exact f32 semantics of the original PyTorch module."""
    x = x / 255.0
    x = jnp.maximum(x @ w1 + b1, 0.0)
    x = jnp.maximum(x @ w2 + b2, 0.0)
    return 255.0 * jax.nn.sigmoid(x @ w3 + b3)


def reference_forward_bf16(x, w1p, b1p, w2p, b2p, w3p, b3p):
    """Same mixed-precision math as the kernel (bf16 operands, f32 accumulation),
    computed with plain XLA ops — tight correctness reference."""
    f32 = jnp.float32
    xq = x.astype(jnp.bfloat16).astype(f32)
    h1 = jnp.maximum(xq @ w1p.astype(f32) + b1p, 0.0)
    h2 = jnp.maximum(h1.astype(jnp.bfloat16).astype(f32) @ w2p.astype(f32) + b2p, 0.0)
    h3 = h2.astype(jnp.bfloat16).astype(f32) @ w3p.astype(f32) + b3p
    return 255.0 * jax.nn.sigmoid(h3)


if __name__ == "__main__":
    key = jax.random.PRNGKey(0)
    batch = 640                 # exercises tiling + ragged last tile: 2 tiles of 512 (last 128 valid rows)
    input_dimensions = 128
    output_dimensions = 256     # hidden dims: 64 and 32 (zero-padded to 128 lanes)

    key, kx = jax.random.split(key)
    # Pixel-like inputs in [0, 255]
    x = jax.random.uniform(kx, (batch, input_dimensions), jnp.float32, 0.0, 255.0)

    w1, b1, w2, b2, w3, b3 = init_params(key, input_dimensions, output_dimensions)
    params = prepare_params(w1, b1, w2, b2, w3, b3)

    out = photo_predict(x, *params)
    out = jax.block_until_ready(out)
    assert out.shape == (batch, output_dimensions)
    assert bool(jnp.all(jnp.isfinite(out)))

    # Tight check vs. an XLA implementation of the exact same mixed-precision math.
    ref_bf16 = reference_forward_bf16(x, *params)
    assert jnp.allclose(out, ref_bf16, atol=5e-2, rtol=1e-3), "kernel != bf16 reference"

    # Sanity check vs. the original f32 module (bf16-level tolerance on a [0,255] output).
    ref_f32 = reference_forward_f32(x, w1, b1, w2, b2, w3, b3)
    assert jnp.allclose(out, ref_f32, atol=4.0, rtol=1e-2), "kernel far from f32 reference"

    print("KERNEL_OK")
</pallas_src>

<mosaic_0001>
module attributes {stable_mosaic.version = 11 : i64} {
  func.func @photo_predict_kernel(%arg0: i32, %arg1: memref<512x128xf32, #tpu.memory_space<vmem>>, %arg2: memref<128x128xbf16, #tpu.memory_space<vmem>>, %arg3: memref<1x128xf32, #tpu.memory_space<vmem>>, %arg4: memref<128x128xbf16, #tpu.memory_space<vmem>>, %arg5: memref<1x128xf32, #tpu.memory_space<vmem>>, %arg6: memref<128x256xbf16, #tpu.memory_space<vmem>>, %arg7: memref<1x256xf32, #tpu.memory_space<vmem>>, %arg8: memref<512x256xf32, #tpu.memory_space<vmem>>) attributes {dimension_semantics = [#tpu.dimension_semantics<parallel>], iteration_bounds = array<i64: 2>, scalar_prefetch = 0 : i64, scratch_operands = 0 : i64, tpu.core_type = #tpu.core_type<tc>, window_params = [{transform_indices = @transform_0, window_bounds = array<i64: 512, 128>}, {pipeline_mode = #tpu.pipeline_mode<synchronous>, transform_indices = @transform_1, window_bounds = array<i64: 128, 128>}, {pipeline_mode = #tpu.pipeline_mode<synchronous>, transform_indices = @transform_2, window_bounds = array<i64: 1, 128>}, {pipeline_mode = #tpu.pipeline_mode<synchronous>, transform_indices = @transform_3, window_bounds = array<i64: 128, 128>}, {pipeline_mode = #tpu.pipeline_mode<synchronous>, transform_indices = @transform_4, window_bounds = array<i64: 1, 128>}, {pipeline_mode = #tpu.pipeline_mode<synchronous>, transform_indices = @transform_5, window_bounds = array<i64: 128, 256>}, {pipeline_mode = #tpu.pipeline_mode<synchronous>, transform_indices = @transform_6, window_bounds = array<i64: 1, 256>}, {transform_indices = @transform_7, window_bounds = array<i64: 512, 256>}]} {
    %c0 = arith.constant 0 : index
    %c0_0 = arith.constant 0 : index
    %0 = vector.load %arg1[%c0, %c0_0] : memref<512x128xf32, #tpu.memory_space<vmem>>, vector<512x128xf32>
    %1 = arith.truncf %0 : vector<512x128xf32> to vector<512x128xbf16>
    %c0_1 = arith.constant 0 : index
    %c0_2 = arith.constant 0 : index
    %2 = vector.load %arg2[%c0_1, %c0_2] : memref<128x128xbf16, #tpu.memory_space<vmem>>, vector<128x128xbf16>
    %cst = arith.constant dense<0.000000e+00> : vector<512x128xf32>
    %3 = tpu.matmul %1, %2, %cst {dimension_numbers = #tpu.dot_dimension_numbers<[1], [0], [0], [1], [0, 0, 1, 1], [], []>} : vector<512x128xbf16>, vector<128x128xbf16>, vector<512x128xf32> -> vector<512x128xf32>
    %c0_3 = arith.constant 0 : index
    %c0_4 = arith.constant 0 : index
    %4 = vector.load %arg3[%c0_3, %c0_4] : memref<1x128xf32, #tpu.memory_space<vmem>>, vector<1x128xf32>
    %5 = vector.broadcast %4 : vector<1x128xf32> to vector<512x128xf32>
    %6 = arith.addf %3, %5 : vector<512x128xf32>
    %cst_5 = arith.constant 0.000000e+00 : f32
    %7 = vector.broadcast %cst_5 : f32 to vector<512x128xf32>
    %8 = arith.maximumf %6, %7 : vector<512x128xf32>
    %9 = arith.truncf %8 : vector<512x128xf32> to vector<512x128xbf16>
    %c0_6 = arith.constant 0 : index
    %c0_7 = arith.constant 0 : index
    %10 = vector.load %arg4[%c0_6, %c0_7] : memref<128x128xbf16, #tpu.memory_space<vmem>>, vector<128x128xbf16>
    %cst_8 = arith.constant dense<0.000000e+00> : vector<512x128xf32>
    %11 = tpu.matmul %9, %10, %cst_8 {dimension_numbers = #tpu.dot_dimension_numbers<[1], [0], [0], [1], [0, 0, 1, 1], [], []>} : vector<512x128xbf16>, vector<128x128xbf16>, vector<512x128xf32> -> vector<512x128xf32>
    %c0_9 = arith.constant 0 : index
    %c0_10 = arith.constant 0 : index
    %12 = vector.load %arg5[%c0_9, %c0_10] : memref<1x128xf32, #tpu.memory_space<vmem>>, vector<1x128xf32>
    %13 = vector.broadcast %12 : vector<1x128xf32> to vector<512x128xf32>
    %14 = arith.addf %11, %13 : vector<512x128xf32>
    %cst_11 = arith.constant 0.000000e+00 : f32
    %15 = vector.broadcast %cst_11 : f32 to vector<512x128xf32>
    %16 = arith.maximumf %14, %15 : vector<512x128xf32>
    %17 = arith.truncf %16 : vector<512x128xf32> to vector<512x128xbf16>
    %c0_12 = arith.constant 0 : index
    %c0_13 = arith.constant 0 : index
    %18 = vector.load %arg6[%c0_12, %c0_13] : memref<128x256xbf16, #tpu.memory_space<vmem>>, vector<128x256xbf16>
    %cst_14 = arith.constant dense<0.000000e+00> : vector<512x256xf32>
    %19 = tpu.matmul %17, %18, %cst_14 {dimension_numbers = #tpu.dot_dimension_numbers<[1], [0], [0], [1], [0, 0, 1, 1], [], []>} : vector<512x128xbf16>, vector<128x256xbf16>, vector<512x256xf32> -> vector<512x256xf32>
    %c0_15 = arith.constant 0 : index
    %c0_16 = arith.constant 0 : index
    %20 = vector.load %arg7[%c0_15, %c0_16] : memref<1x256xf32, #tpu.memory_space<vmem>>, vector<1x256xf32>
    %21 = vector.broadcast %20 : vector<1x256xf32> to vector<512x256xf32>
    %22 = arith.addf %19, %21 : vector<512x256xf32>
    %23 = arith.negf %22 : vector<512x256xf32>
    %24 = math.exp %23 : vector<512x256xf32>
    %cst_17 = arith.constant 1.000000e+00 : f32
    %25 = vector.broadcast %cst_17 : f32 to vector<512x256xf32>
    %26 = arith.addf %25, %24 : vector<512x256xf32>
    %27 = arith.divf %25, %26 : vector<512x256xf32>
    %cst_18 = arith.constant 2.550000e+02 : f32
    %28 = vector.broadcast %cst_18 : f32 to vector<512x256xf32>
    %29 = arith.mulf %28, %27 : vector<512x256xf32>
    %c0_19 = arith.constant 0 : index
    %c0_20 = arith.constant 0 : index
    %30 = vector.load %arg8[%c0_19, %c0_20] : memref<512x256xf32, #tpu.memory_space<vmem>>, vector<512x256xf32>
    tpu.vector_store %arg8[%c0_19, %c0_20], %29 {strides = array<i32>} : memref<512x256xf32, #tpu.memory_space<vmem>>, vector<512x256xf32>,
    return
  }
  func.func @transform_0(%arg0: i32) -> (i32, i32) {
    %c0_i32 = arith.constant 0 : i32
    %c0_i32_0 = arith.constant 0 : i32
    return %arg0, %c0_i32 : i32, i32
  }
  func.func @transform_1(%arg0: i32) -> (i32, i32) {
    %c0_i32 = arith.constant 0 : i32
    %c0_i32_0 = arith.constant 0 : i32
    %c0_i32_1 = arith.constant 0 : i32
    return %c0_i32, %c0_i32_0 : i32, i32
  }
  func.func @transform_2(%arg0: i32) -> (i32, i32) {
    %c0_i32 = arith.constant 0 : i32
    %c0_i32_0 = arith.constant 0 : i32
    %c0_i32_1 = arith.constant 0 : i32
    return %c0_i32, %c0_i32_0 : i32, i32
  }
  func.func @transform_3(%arg0: i32) -> (i32, i32) {
    %c0_i32 = arith.constant 0 : i32
    %c0_i32_0 = arith.constant 0 : i32
    %c0_i32_1 = arith.constant 0 : i32
    return %c0_i32, %c0_i32_0 : i32, i32
  }
  func.func @transform_4(%arg0: i32) -> (i32, i32) {
    %c0_i32 = arith.constant 0 : i32
    %c0_i32_0 = arith.constant 0 : i32
    %c0_i32_1 = arith.constant 0 : i32
    return %c0_i32, %c0_i32_0 : i32, i32
  }
  func.func @transform_5(%arg0: i32) -> (i32, i32) {
    %c0_i32 = arith.constant 0 : i32
    %c0_i32_0 = arith.constant 0 : i32
    %c0_i32_1 = arith.constant 0 : i32
    return %c0_i32, %c0_i32_0 : i32, i32
  }
  func.func @transform_6(%arg0: i32) -> (i32, i32) {
    %c0_i32 = arith.constant 0 : i32
    %c0_i32_0 = arith.constant 0 : i32
    %c0_i32_1 = arith.constant 0 : i32
    return %c0_i32, %c0_i32_0 : i32, i32
  }
  func.func @transform_7(%arg0: i32) -> (i32, i32) {
    %c0_i32 = arith.constant 0 : i32
    %c0_i32_0 = arith.constant 0 : i32
    return %arg0, %c0_i32 : i32, i32
  }
}

</mosaic_0001>

<llo_original>
// kernel: tpu_custom_call.1
$region0: #{tpu_custom_call.1}
  #allocation0 [shape = 'u32[]', space=smem, size = 0x4, offset = 0x4, fixed_abs, tag = 'smem constant byte address 0x4 - core index']
  #allocation1 [shape = 'u32[144,128]{1,0:T(1,128)}', space=vmem, size = 0x12000, scoped, tag = 'internal scratch']
  %s0 = inlined_call_operand.hbm [shape: f32[640,128], index: 0, kind: input, shape index: {}]
  %s1 = inlined_call_operand.hbm [shape: bf16[128,128], index: 1, kind: input, shape index: {}]
  %s2 = inlined_call_operand.vmem [shape: f32[1,128], index: 2, kind: input, shape index: {}]
  %s3 = inlined_call_operand.hbm [shape: bf16[128,128], index: 3, kind: input, shape index: {}]
  %s4 = inlined_call_operand.vmem [shape: f32[1,128], index: 4, kind: input, shape index: {}]
  %s5 = inlined_call_operand.hbm [shape: bf16[128,256], index: 5, kind: input, shape index: {}]
  %s6 = inlined_call_operand.vmem [shape: f32[1,256], index: 6, kind: input, shape index: {}]
  %s7 = inlined_call_operand.hbm [shape: f32[640,256], index: 7, kind: output, shape index: {}]
  %s8 = sld [smem:[#allocation0]]
  $region77: #{tpu_custom_call.1} parent=0
    _
  %s10 = ssub.s32 1, %s8
  %s11 = scalar_select 0, %s10, %s8
  $region1: #{tpu_custom_call.1} parent=0
    #allocation2 [shape = 'u8[524288]{0}', space=vmem, size = 0x80000, scoped, tag = 'input window, operand 0']
    #allocation3 [shape = 's32[2]{0}', space=sflag, size = 0x8, scoped, tag = 'scoped memory for tpu_custom_call.1']
    #allocation4 [shape = 's32[2]{0}', space=sflag, size = 0x8, scoped, tag = 'scoped memory for tpu_custom_call.1']
    #allocation5 [shape = 'u8[32768]{0}', space=vmem, size = 0x8000, scoped, tag = 'input window, operand 1, single buffered']
    #allocation6 [shape = 's32[1]{0}', space=sflag, size = 0x4, scoped, tag = 'scoped memory for tpu_custom_call.1']
    #allocation7 [shape = 'u8[32768]{0}', space=vmem, size = 0x8000, scoped, tag = 'input window, operand 3, single buffered']
    #allocation8 [shape = 'u8[65536]{0}', space=vmem, size = 0x10000, scoped, tag = 'input window, operand 5, single buffered']
    #allocation9 [shape = 's32[1]{0}', space=sflag, size = 0x4, scoped, tag = 'scoped memory for tpu_custom_call.1']
    #allocation10 [shape = 'u8[1048576]{0}', space=vmem, size = 0x100000, scoped, tag = 'output window, operand 0']
    %12 = vsyncpa [#allocation3], 0
    %s13 = scalar_lea.sflag [#allocation3], 1
    %14 = vsyncpa %s13, 0
    %15 = vsyncpa [#allocation6], 0
    %16 = vsyncpa [#allocation9], 0
    %17 = vsyncpa [#allocation4], 0
    %s18 = scalar_lea.sflag [#allocation4], 1
    %19 = vsyncpa %s18, 0
    loop: start=0, step=1, limit=4
    $region2: #{tpu_custom_call.1} parent=1 // loop_pre_header
      _
    $region3: #{tpu_custom_call.1} parent=1 // loop_header
      %s21 = sphi 0, %s25
      %p22 = scmp.ge.s32.totalorder %s21, 4
      %s31 = sphi 0, %s33
      %s34 = sphi 0, %s31
      %s35 = sphi 0, %s34
      %s51 = sphi 0, %s35
      %s55 = sphi 0, %s55
      %s57 = sphi 0, %s55
      %s58 = sphi 0, %s57
      %s72 = sphi 0, %s58
      %s76 = sphi 0, %s76
      %s78 = sphi 0, %s76
      %s79 = sphi 0, %s78
      %s93 = sphi 0, %s79
      %s97 = sphi 0, %s97
      %s99 = sphi 0, %s97
      %s100 = sphi 0, %s99
      %s114 = sphi 0, %s100
      %s118 = sphi 0, %s118
      %s120 = sphi 0, %s118
      %s121 = sphi 0, %s120
      %s135 = sphi 0, %s121
      %s139 = sphi 0, %s139
      %s141 = sphi 0, %s139
      %s142 = sphi 0, %s141
      %s156 = sphi 0, %s142
      %s160 = sphi 0, %s160
      %s162 = sphi 0, %s160
      %s163 = sphi 0, %s162
      %s177 = sphi 0, %s163
      %s183 = sphi 0, %s185
      %s186 = sphi 0, %s183
      %s187 = sphi 0, %s186
      %s203 = sphi 0, %s187
    $region4: #{tpu_custom_call.1} parent=1 // loop_header_branch
      %24 = sbr.rel (%p22) target = $region8
    $region5: #{tpu_custom_call.1} parent=1 // loop_body
      %s26 = ssub.s32 %s21, 1
      %s27 = ssub.s32 %s21, 2
      %s28 = sadd.s32 %s21, 1
      %s29 = ssub.s32 %s21, %s28
      %p30 = scmp.eq.s32.totalorder %s29, 0
      %s32 = sadd.s32 %s31, 1
      %s33 = scalar_select %p30, %s31, %s32
      %p36 = pneg %p30
      %p37 = scmp.eq.s32.totalorder %s21, 1
      %p38 = por %p36, %p37
      %p39 = scmp.ne.s32.totalorder %s31, %s34
      %p40 = scmp.eq.s32.totalorder %s21, 0
      %p41 = por %p39, %p40
      %p42 = scmp.ne.s32.totalorder %s31, %s34
      %p43 = scmp.eq.s32.totalorder %s26, 1
      %p44 = por %p42, %p43
      %p45 = scmp.ne.s32.totalorder %s34, %s35
      %p46 = scmp.eq.s32.totalorder %s26, 0
      %p47 = por %p45, %p46
      %p48 = scmp.ne.s32.totalorder %s34, %s35
      %p49 = scmp.eq.s32.totalorder %s27, 1
      %p50 = por %p48, %p49
      %p52 = scmp.ne.s32.totalorder %s35, %s51
      %p53 = scmp.eq.s32.totalorder %s27, 0
      %p54 = por %p52, %p53
      %s56 = sadd.s32 %s55, 1
      %p59 = scmp.eq.s32.totalorder %s21, 1
      %p60 = scmp.ne.s32.totalorder %s55, %s57
      %p61 = scmp.eq.s32.totalorder %s21, 0
      %p62 = por %p60, %p61
      %p63 = scmp.ne.s32.totalorder %s55, %s57
      %p64 = scmp.eq.s32.totalorder %s26, 1
      %p65 = por %p63, %p64
      %p66 = scmp.ne.s32.totalorder %s57, %s58
      %p67 = scmp.eq.s32.totalorder %s26, 0
      %p68 = por %p66, %p67
      %p69 = scmp.ne.s32.totalorder %s57, %s58
      %p70 = scmp.eq.s32.totalorder %s27, 1
      %p71 = por %p69, %p70
      %p73 = scmp.ne.s32.totalorder %s58, %s72
      %p74 = scmp.eq.s32.totalorder %s27, 0
      %p75 = por %p73, %p74
      %s77 = sadd.s32 %s76, 1
      %p80 = scmp.eq.s32.totalorder %s21, 1
      %p81 = scmp.ne.s32.totalorder %s76, %s78
      %p82 = scmp.eq.s32.totalorder %s21, 0
      %p83 = por %p81, %p82
      %p84 = scmp.ne.s32.totalorder %s76, %s78
      %p85 = scmp.eq.s32.totalorder %s26, 1
      %p86 = por %p84, %p85
      %p87 = scmp.ne.s32.totalorder %s78, %s79
      %p88 = scmp.eq.s32.totalorder %s26, 0
      %p89 = por %p87, %p88
      %p90 = scmp.ne.s32.totalorder %s78, %s79
      %p91 = scmp.eq.s32.totalorder %s27, 1
      %p92 = por %p90, %p91
      %p94 = scmp.ne.s32.totalorder %s79, %s93
      %p95 = scmp.eq.s32.totalorder %s27, 0
      %p96 = por %p94, %p95
      %s98 = sadd.s32 %s97, 1
      %p101 = scmp.eq.s32.totalorder %s21, 1
      %p102 = scmp.ne.s32.totalorder %s97, %s99
      %p103 = scmp.eq.s32.totalorder %s21, 0
      %p104 = por %p102, %p103
      %p105 = scmp.ne.s32.totalorder %s97, %s99
      %p106 = scmp.eq.s32.totalorder %s26, 1
      %p107 = por %p105, %p106
      %p108 = scmp.ne.s32.totalorder %s99, %s100
      %p109 = scmp.eq.s32.totalorder %s26, 0
      %p110 = por %p108, %p109
      %p111 = scmp.ne.s32.totalorder %s99, %s100
      %p112 = scmp.eq.s32.totalorder %s27, 1
      %p113 = por %p111, %p112
      %p115 = scmp.ne.s32.totalorder %s100, %s114
      %p116 = scmp.eq.s32.totalorder %s27, 0
      %p117 = por %p115, %p116
      %s119 = sadd.s32 %s118, 1
      %p122 = scmp.eq.s32.totalorder %s21, 1
      %p123 = scmp.ne.s32.totalorder %s118, %s120
      %p124 = scmp.eq.s32.totalorder %s21, 0
      %p125 = por %p123, %p124
      %p126 = scmp.ne.s32.totalorder %s118, %s120
      %p127 = scmp.eq.s32.totalorder %s26, 1
      %p128 = por %p126, %p127
      %p129 = scmp.ne.s32.totalorder %s120, %s121
      %p130 = scmp.eq.s32.totalorder %s26, 0
      %p131 = por %p129, %p130
      %p132 = scmp.ne.s32.totalorder %s120, %s121
      %p133 = scmp.eq.s32.totalorder %s27, 1
      %p134 = por %p132, %p133
      %p136 = scmp.ne.s32.totalorder %s121, %s135
      %p137 = scmp.eq.s32.totalorder %s27, 0
      %p138 = por %p136, %p137
      %s140 = sadd.s32 %s139, 1
      %p143 = scmp.eq.s32.totalorder %s21, 1
      %p144 = scmp.ne.s32.totalorder %s139, %s141
      %p145 = scmp.eq.s32.totalorder %s21, 0
      %p146 = por %p144, %p145
      %p147 = scmp.ne.s32.totalorder %s139, %s141
      %p148 = scmp.eq.s32.totalorder %s26, 1
      %p149 = por %p147, %p148
      %p150 = scmp.ne.s32.totalorder %s141, %s142
      %p151 = scmp.eq.s32.totalorder %s26, 0
      %p152 = por %p150, %p151
      %p153 = scmp.ne.s32.totalorder %s141, %s142
      %p154 = scmp.eq.s32.totalorder %s27, 1
      %p155 = por %p153, %p154
      %p157 = scmp.ne.s32.totalorder %s142, %s156
      %p158 = scmp.eq.s32.totalorder %s27, 0
      %p159 = por %p157, %p158
      %s161 = sadd.s32 %s160, 1
      %p164 = scmp.eq.s32.totalorder %s21, 1
      %p165 = scmp.ne.s32.totalorder %s160, %s162
      %p166 = scmp.eq.s32.totalorder %s21, 0
      %p167 = por %p165, %p166
      %p168 = scmp.ne.s32.totalorder %s160, %s162
      %p169 = scmp.eq.s32.totalorder %s26, 1
      %p170 = por %p168, %p169
      %p171 = scmp.ne.s32.totalorder %s162, %s163
      %p172 = scmp.eq.s32.totalorder %s26, 0
      %p173 = por %p171, %p172
      %p174 = scmp.ne.s32.totalorder %s162, %s163
      %p175 = scmp.eq.s32.totalorder %s27, 1
      %p176 = por %p174, %p175
      %p178 = scmp.ne.s32.totalorder %s163, %s177
      %p179 = scmp.eq.s32.totalorder %s27, 0
      %p180 = por %p178, %p179
      %s181 = ssub.s32 %s21, %s28
      %p182 = scmp.eq.s32.totalorder %s181, 0
      %s184 = sadd.s32 %s183, 1
      %s185 = scalar_select %p182, %s183, %s184
      %p188 = pneg %p182
      %p189 = scmp.eq.s32.totalorder %s21, 1
      %p190 = por %p188, %p189
      %p191 = scmp.ne.s32.totalorder %s183, %s186
      %p192 = scmp.eq.s32.totalorder %s21, 0
      %p193 = por %p191, %p192
      %p194 = scmp.ne.s32.totalorder %s183, %s186
      %p195 = scmp.eq.s32.totalorder %s26, 1
      %p196 = por %p194, %p195
      %p197 = scmp.ne.s32.totalorder %s186, %s187
      %p198 = scmp.eq.s32.totalorder %s26, 0
      %p199 = por %p197, %p198
      %p200 = scmp.ne.s32.totalorder %s186, %s187
      %p201 = scmp.eq.s32.totalorder %s27, 1
      %p202 = por %p200, %p201
      %p204 = scmp.ne.s32.totalorder %s187, %s203
      %p205 = scmp.eq.s32.totalorder %s27, 0
      %p206 = por %p204, %p205
      %p207 = scmp.le.s32.totalorder 1, %s21
      %p208 = scmp.lt.s32.totalorder %s21, 3
      %p209 = pnand %p207, %p208
      %p210 = pneg %p209
      // Predicated region
      $region9: #{tpu_custom_call.1} parent=5 // pred_check
        _
      $region10: #{tpu_custom_call.1} parent=5 // pred_check_branch
        %212 = sbr.rel (%p209) target = $region12
      $region11: #{tpu_custom_call.1} parent=5 // pred_region
        %s213 = ssub.s32 %s21, 1
        // Predicated region
        $region13: #{tpu_custom_call.1} parent=11 // pred_check
          %p214 = pneg %p68
        $region14: #{tpu_custom_call.1} parent=11 // pred_check_branch
          %216 = sbr.rel (%p214) target = $region16
        $region15: #{tpu_custom_call.1} parent=11 // pred_region
          %s218 = ssub.s32 1024, 1024
          %219 = vsyncadd [#allocation6], %s218
          %s220 = sshll.u32 [#allocation5], 4
          %s221 = int_to_ptr.vmem [resolvable:$true] %s220
          %226 = dma.hbm_to_vmem [thread:$0]  %s1, 1024, %s221, [#allocation6], 64, 64, 4
        $region16: #{tpu_custom_call.1} parent=11 // pred_fallthru
          _
        // Predicated region
        $region17: #{tpu_custom_call.1} parent=11 // pred_check
          %p227 = pneg %p89
        $region18: #{tpu_custom_call.1} parent=11 // pred_check_branch
          %229 = sbr.rel (%p227) target = $region20
        $region19: #{tpu_custom_call.1} parent=11 // pred_region
          _
        $region20: #{tpu_custom_call.1} parent=11 // pred_fallthru
          _
        // Predicated region
        $region21: #{tpu_custom_call.1} parent=11 // pred_check
          %p230 = pneg %p110
        $region22: #{tpu_custom_call.1} parent=11 // pred_check_branch
          %232 = sbr.rel (%p230) target = $region24
        $region23: #{tpu_custom_call.1} parent=11 // pred_region
          %s234 = ssub.s32 1024, 1024
          %235 = vsyncadd [#allocation6], %s234
          %s236 = sshll.u32 [#allocation7], 4
          %s237 = int_to_ptr.vmem [resolvable:$true] %s236
          %242 = dma.hbm_to_vmem [thread:$0]  %s3, 1024, %s237, [#allocation6], 64, 64, 4
        $region24: #{tpu_custom_call.1} parent=11 // pred_fallthru
          _
        // Predicated region
        $region25: #{tpu_custom_call.1} parent=11 // pred_check
          %p243 = pneg %p131
        $region26: #{tpu_custom_call.1} parent=11 // pred_check_branch
          %245 = sbr.rel (%p243) target = $region28
        $region27: #{tpu_custom_call.1} parent=11 // pred_region
          _
        $region28: #{tpu_custom_call.1} parent=11 // pred_fallthru
          _
        // Predicated region
        $region29: #{tpu_custom_call.1} parent=11 // pred_check
          %p246 = pneg %p152
        $region30: #{tpu_custom_call.1} parent=11 // pred_check_branch
          %248 = sbr.rel (%p246) target = $region32
        $region31: #{tpu_custom_call.1} parent=11 // pred_region
          %s250 = ssub.s32 2048, 2048
          %251 = vsyncadd [#allocation9], %s250
          %s252 = sshll.u32 [#allocation8], 4
          %s253 = int_to_ptr.vmem [resolvable:$true] %s252
          %258 = dma.hbm_to_vmem [thread:$0]  %s5, 2048, %s253, [#allocation9], 128, 128, 8
        $region32: #{tpu_custom_call.1} parent=11 // pred_fallthru
          _
        // Predicated region
        $region33: #{tpu_custom_call.1} parent=11 // pred_check
          %p259 = pneg %p173
        $region34: #{tpu_custom_call.1} parent=11 // pred_check_branch
          %261 = sbr.rel (%p259) target = $region36
        $region35: #{tpu_custom_call.1} parent=11 // pred_region
          _
        $region36: #{tpu_custom_call.1} parent=11 // pred_fallthru
          _
      $region12: #{tpu_custom_call.1} parent=5 // pred_fallthru
        _
      %p262 = scmp.lt.s32.totalorder %s21, 2
      // Predicated region
      $region37: #{tpu_custom_call.1} parent=5 // pred_check
        %p263 = pneg %p262
      $region38: #{tpu_custom_call.1} parent=5 // pred_check_branch
        %265 = sbr.rel (%p263) target = $region40
      $region39: #{tpu_custom_call.1} parent=5 // pred_region
        // Predicated region
        $region41: #{tpu_custom_call.1} parent=39 // pred_check
          %p266 = pneg %p41
        $region42: #{tpu_custom_call.1} parent=39 // pred_check_branch
          %268 = sbr.rel (%p266) target = $region44
        $region43: #{tpu_custom_call.1} parent=39 // pred_region
          %s269 = sand.u32 %s31, 1
          %s270 = scalar_lea.sflag [#allocation3], %s269
          %s271 = sand.u32 %s31, 1
          %s272 = smul.addr %s271, 512
          %s273 = scalar_lea.vmem [#allocation2], %s272
          %s274 = smul.u32 64, %s21
          %s275 = ssub.s32 80, %s274
          %p276 = scmp.lt.s32.totalorder %s275, 64
          %s277 = scalar_select %p276, %s275, 64
          %s278 = smul.u32 128, %s277
          %s280 = ssub.s32 8192, %s278
          %281 = vsyncadd %s270, %s280
          %p282 = scmp.ne.s32.totalorder 0, %s278
          %s283 = smul.addr %s274, 128
          %s284 = scalar_lea.hbm %s0, %s283
          %s285 = smul.u32 8, %s277
          %s286 = sshll.u32 %s273, 4
          %s287 = int_to_ptr.vmem [resolvable:$true] %s286
          %s288 = sshll.u32 %s285, 4
          %292 = dma.hbm_to_vmem [thread:$0]  (%p282), %s284, %s288, %s287, %s270, 128, 128, 8
        $region44: #{tpu_custom_call.1} parent=39 // pred_fallthru
          _
      $region40: #{tpu_custom_call.1} parent=5 // pred_fallthru
        _
      %p293 = scmp.le.s32.totalorder 1, %s21
      %p294 = scmp.lt.s32.totalorder %s21, 3
      %p295 = pnand %p293, %p294
      %p296 = pneg %p295
      // Predicated region
      $region45: #{tpu_custom_call.1} parent=5 // pred_check
        _
      $region46: #{tpu_custom_call.1} parent=5 // pred_check_branch
        %298 = sbr.rel (%p295) target = $region48
      $region47: #{tpu_custom_call.1} parent=5 // pred_region
        %s299 = ssub.s32 %s21, 1
        %s300 = sand.u32 %s34, 1
        %s301 = scalar_lea.sflag [#allocation3], %s300
        %s302 = sand.u32 %s34, 1
        %s303 = smul.addr %s302, 512
        %s304 = scalar_lea.vmem [#allocation2], %s303
        // Predicated region
        $region49: #{tpu_custom_call.1} parent=47 // pred_check
          %p305 = pneg %p47
        $region50: #{tpu_custom_call.1} parent=47 // pred_check_branch
          %307 = sbr.rel (%p305) target = $region52
        $region51: #{tpu_custom_call.1} parent=47 // pred_region
          %308 = dma.done %s301, 8192
        $region52: #{tpu_custom_call.1} parent=47 // pred_fallthru
          _
        // Predicated region
        $region53: #{tpu_custom_call.1} parent=47 // pred_check
          %p309 = pneg %p68
        $region54: #{tpu_custom_call.1} parent=47 // pred_check_branch
          %311 = sbr.rel (%p309) target = $region56
        $region55: #{tpu_custom_call.1} parent=47 // pred_region
          %312 = dma.done [#allocation6], 1024
        $region56: #{tpu_custom_call.1} parent=47 // pred_fallthru
          _
        // Predicated region
        $region57: #{tpu_custom_call.1} parent=47 // pred_check
          %p313 = pneg %p110
        $region58: #{tpu_custom_call.1} parent=47 // pred_check_branch
          %315 = sbr.rel (%p313) target = $region60
        $region59: #{tpu_custom_call.1} parent=47 // pred_region
          %316 = dma.done [#allocation6], 1024
        $region60: #{tpu_custom_call.1} parent=47 // pred_fallthru
          _
        // Predicated region
        $region61: #{tpu_custom_call.1} parent=47 // pred_check
          %p317 = pneg %p152
        $region62: #{tpu_custom_call.1} parent=47 // pred_check_branch
          %319 = sbr.rel (%p317) target = $region64
        $region63: #{tpu_custom_call.1} parent=47 // pred_region
          %320 = dma.done [#allocation9], 2048
        $region64: #{tpu_custom_call.1} parent=47 // pred_fallthru
          _
        %s321 = sand.u32 %s34, 1
        %s322 = scalar_lea.sflag [#allocation3], %s321
        %s323 = sand.u32 %s34, 1
        %s324 = smul.addr %s323, 512
        %s325 = scalar_lea.vmem [#allocation2], %s324
        %p326 = pneg %p47
        %p327 = pneg %p44
        %p328 = pneg %p68
        %p329 = pneg %p65
        %p330 = pneg %p89
        %p331 = pneg %p86
        %p332 = pneg %p110
        %p333 = pneg %p107
        %p334 = pneg %p131
        %p335 = pneg %p128
        %p336 = pneg %p152
        %p337 = pneg %p149
        %p338 = pneg %p173
        %p339 = pneg %p170
        %p340 = pneg %p199
        %p341 = pneg %p196
        %s342 = sand.u32 %s186, 1
        %s343 = scalar_lea.sflag [#allocation4], %s342
        %s344 = sand.u32 %s186, 1
        %s345 = smul.addr %s344, 1024
        %s346 = scalar_lea.vmem [#allocation10], %s345
        %s347 = smul.u32 64, %s26
        %s348 = ssub.s32 80, %s347
        %p349 = scmp.lt.s32.totalorder %s348, 64
        %s350 = scalar_select %p349, %s348, 64
        %s351 = smul.u32 128, %s350
        %s352 = smul.u32 64, %s26
        %s353 = ssub.s32 80, %s352
        %p354 = scmp.lt.s32.totalorder %s353, 64
        %s355 = scalar_select %p354, %s353, 64
        %s356 = smul.u32 128, %s355
        %s357 = smul.u32 %s356, 2
        %v359 = vld [vmem:[%s304] sm:$0xff]
        %v360 = vld [vmem:[%s304 + $0x8] sm:$0xff]
        %v361 = vld [vmem:[%s304 + $0x10] sm:$0xff]
        %v362 = vld [vmem:[%s304 + $0x18] sm:$0xff]
        %v363 = vld [vmem:[%s304 + $0x20] sm:$0xff]
        %v364 = vld [vmem:[%s304 + $0x28] sm:$0xff]
        %v365 = vld [vmem:[%s304 + $0x30] sm:$0xff]
        %v366 = vld [vmem:[%s304 + $0x38] sm:$0xff]
        %v367 = vld [vmem:[%s304 + $0x40] sm:$0xff]
        %v368 = vld [vmem:[%s304 + $0x48] sm:$0xff]
        %v369 = vld [vmem:[%s304 + $0x50] sm:$0xff]
        %v370 = vld [vmem:[%s304 + $0x58] sm:$0xff]
        %v371 = vld [vmem:[%s304 + $0x60] sm:$0xff]
        %v372 = vld [vmem:[%s304 + $0x68] sm:$0xff]
        %v373 = vld [vmem:[%s304 + $0x70] sm:$0xff]
        %v374 = vld [vmem:[%s304 + $0x78] sm:$0xff]
        %v375 = vld [vmem:[%s304 + $0x80] sm:$0xff]
        %v376 = vld [vmem:[%s304 + $0x88] sm:$0xff]
        %v377 = vld [vmem:[%s304 + $0x90] sm:$0xff]
        %v378 = vld [vmem:[%s304 + $0x98] sm:$0xff]
        %v379 = vld [vmem:[%s304 + $0xa0] sm:$0xff]
        %v380 = vld [vmem:[%s304 + $0xa8] sm:$0xff]
        %v381 = vld [vmem:[%s304 + $0xb0] sm:$0xff]
        %v382 = vld [vmem:[%s304 + $0xb8] sm:$0xff]
        %v383 = vld [vmem:[%s304 + $0xc0] sm:$0xff]
        %v384 = vld [vmem:[%s304 + $0xc8] sm:$0xff]
        %v385 = vld [vmem:[%s304 + $0xd0] sm:$0xff]
        %v386 = vld [vmem:[%s304 + $0xd8] sm:$0xff]
        %v387 = vld [vmem:[%s304 + $0xe0] sm:$0xff]
        %v388 = vld [vmem:[%s304 + $0xe8] sm:$0xff]
        %v389 = vld [vmem:[%s304 + $0xf0] sm:$0xff]
        %v390 = vld [vmem:[%s304 + $0xf8] sm:$0xff]
        %v391 = vld [vmem:[%s304 + $0x100] sm:$0xff]
        %v392 = vld [vmem:[%s304 + $0x108] sm:$0xff]
        %v393 = vld [vmem:[%s304 + $0x110] sm:$0xff]
        %v394 = vld [vmem:[%s304 + $0x118] sm:$0xff]
        %v395 = vld [vmem:[%s304 + $0x120] sm:$0xff]
        %v396 = vld [vmem:[%s304 + $0x128] sm:$0xff]
        %v397 = vld [vmem:[%s304 + $0x130] sm:$0xff]
        %v398 = vld [vmem:[%s304 + $0x138] sm:$0xff]
        %v399 = vld [vmem:[%s304 + $0x140] sm:$0xff]
        %v400 = vld [vmem:[%s304 + $0x148] sm:$0xff]
        %v401 = vld [vmem:[%s304 + $0x150] sm:$0xff]
        %v402 = vld [vmem:[%s304 + $0x158] sm:$0xff]
        %v403 = vld [vmem:[%s304 + $0x160] sm:$0xff]
        %v404 = vld [vmem:[%s304 + $0x168] sm:$0xff]
        %v405 = vld [vmem:[%s304 + $0x170] sm:$0xff]
        %v406 = vld [vmem:[%s304 + $0x178] sm:$0xff]
        %v407 = vld [vmem:[%s304 + $0x180] sm:$0xff]
        %v408 = vld [vmem:[%s304 + $0x188] sm:$0xff]
        %v409 = vld [vmem:[%s304 + $0x190] sm:$0xff]
        %v410 = vld [vmem:[%s304 + $0x198] sm:$0xff]
        %v411 = vld [vmem:[%s304 + $0x1a0] sm:$0xff]
        %v412 = vld [vmem:[%s304 + $0x1a8] sm:$0xff]
        %v413 = vld [vmem:[%s304 + $0x1b0] sm:$0xff]
        %v414 = vld [vmem:[%s304 + $0x1b8] sm:$0xff]
        %v415 = vld [vmem:[%s304 + $0x1c0] sm:$0xff]
        %v416 = vld [vmem:[%s304 + $0x1c8] sm:$0xff]
        %v417 = vld [vmem:[%s304 + $0x1d0] sm:$0xff]
        %v418 = vld [vmem:[%s304 + $0x1d8] sm:$0xff]
        %v419 = vld [vmem:[%s304 + $0x1e0] sm:$0xff]
        %v420 = vld [vmem:[%s304 + $0x1e8] sm:$0xff]
        %v421 = vld [vmem:[%s304 + $0x1f0] sm:$0xff]
        %v422 = vld [vmem:[%s304 + $0x1f8] sm:$0xff]
        %v423 = vpack.c.bf16 %v360, %v359
        %v424 = vpack.c.bf16 %v362, %v361
        %v425 = vpack.c.bf16 %v364, %v363
        %v426 = vpack.c.bf16 %v366, %v365
        %v427 = vpack.c.bf16 %v368, %v367
        %v428 = vpack.c.bf16 %v370, %v369
        %v429 = vpack.c.bf16 %v372, %v371
        %v430 = vpack.c.bf16 %v374, %v373
        %v431 = vpack.c.bf16 %v376, %v375
        %v432 = vpack.c.bf16 %v378, %v377
        %v433 = vpack.c.bf16 %v380, %v379
        %v434 = vpack.c.bf16 %v382, %v381
        %v435 = vpack.c.bf16 %v384, %v383
        %v436 = vpack.c.bf16 %v386, %v385
        %v437 = vpack.c.bf16 %v388, %v387
        %v438 = vpack.c.bf16 %v390, %v389
        %v439 = vpack.c.bf16 %v392, %v391
        %v440 = vpack.c.bf16 %v394, %v393
        %v441 = vpack.c.bf16 %v396, %v395
        %v442 = vpack.c.bf16 %v398, %v397
        %v443 = vpack.c.bf16 %v400, %v399
        %v444 = vpack.c.bf16 %v402, %v401
        %v445 = vpack.c.bf16 %v404, %v403
        %v446 = vpack.c.bf16 %v406, %v405
        %v447 = vpack.c.bf16 %v408, %v407
        %v448 = vpack.c.bf16 %v410, %v409
        %v449 = vpack.c.bf16 %v412, %v411
        %v450 = vpack.c.bf16 %v414, %v413
        %v451 = vpack.c.bf16 %v416, %v415
        %v452 = vpack.c.bf16 %v418, %v417
        %v453 = vpack.c.bf16 %v420, %v419
        %v454 = vpack.c.bf16 %v422, %v421
        %v455 = vld [vmem:[#allocation5] sm:$0xf]
        %v456 = vld [vmem:[#allocation5 + $0x4] sm:$0xf]
        %v457 = vld [vmem:[#allocation5 + $0x8] sm:$0xf]
        %v458 = vld [vmem:[#allocation5 + $0xc] sm:$0xf]
        %v459 = vld [vmem:[#allocation5 + $0x10] sm:$0xf]
        %v460 = vld [vmem:[#allocation5 + $0x14] sm:$0xf]
        %v461 = vld [vmem:[#allocation5 + $0x18] sm:$0xf]
        %v462 = vld [vmem:[#allocation5 + $0x1c] sm:$0xf]
        %v463 = vld [vmem:[#allocation5 + $0x20] sm:$0xf]
        %v464 = vld [vmem:[#allocation5 + $0x24] sm:$0xf]
        %v465 = vld [vmem:[#allocation5 + $0x28] sm:$0xf]
        %v466 = vld [vmem:[#allocation5 + $0x2c] sm:$0xf]
        %v467 = vld [vmem:[#allocation5 + $0x30] sm:$0xf]
        %v468 = vld [vmem:[#allocation5 + $0x34] sm:$0xf]
        %v469 = vld [vmem:[#allocation5 + $0x38] sm:$0xf]
        %v470 = vld [vmem:[#allocation5 + $0x3c] sm:$0xf]
        %v471 = vld [vmem:[%s2] sm:$0x1]
        %v473 = vlaneseq
        %v474 = vshrl.u32 %v473, 7
        %v475 = vsub.s32 0, %v474
        %v476 = vrot.slane %v471, %v475
        %v494 = vunpack.c.l.b16 %v455
        %v495 = vunpack.c.l.b16 %v456
        %v496 = vunpack.c.l.b16 %v457
        %v497 = vunpack.c.l.b16 %v458
        %v498 = vunpack.c.l.b16 %v459
        %v499 = vunpack.c.l.b16 %v460
        %v500 = vunpack.c.l.b16 %v461
        %v501 = vunpack.c.l.b16 %v462
        %v502 = vunpack.c.l.b16 %v463
        %v503 = vunpack.c.l.b16 %v464
        %v504 = vunpack.c.l.b16 %v465
        %v505 = vunpack.c.l.b16 %v466
        %v506 = vunpack.c.l.b16 %v467
        %v507 = vunpack.c.l.b16 %v468
        %v508 = vunpack.c.l.b16 %v469
        %v509 = vunpack.c.l.b16 %v470
        %v510 = vpack.c.b16 %v495, %v494
        %v511 = vpack.c.b16 %v497, %v496
        %v512 = vpack.c.b16 %v499, %v498
        %v513 = vpack.c.b16 %v501, %v500
        %v514 = vpack.c.b16 %v503, %v502
        %v515 = vpack.c.b16 %v505, %v504
        %v516 = vpack.c.b16 %v507, %v506
        %v517 = vpack.c.b16 %v509, %v508
        %526 = vmatprep.subr.bf16.mxu0 0
        %527 = vmatpush1.bf16.msra.mxu0 %v510
        %528 = vmatprep.subr.bf16.mxu0 0
        %529 = vmatpush1.bf16.msra.mxu0 %v511
        %530 = vmatprep.subr.bf16.mxu0 0
        %531 = vmatpush1.bf16.msra.mxu0 %v512
        %532 = vmatprep.subr.bf16.mxu0 0
        %533 = vmatpush1.bf16.msra.mxu0 %v513
        %534 = vmatprep.subr.bf16.mxu0 0
        %535 = vmatpush1.bf16.msra.mxu0 %v514
        %536 = vmatprep.subr.bf16.mxu0 0
        %537 = vmatpush1.bf16.msra.mxu0 %v515
        %538 = vmatprep.subr.bf16.mxu0 0
        %539 = vmatpush1.bf16.msra.mxu0 %v516
        %540 = vmatprep.subr.bf16.mxu0 0
        %541 = vmatpush1.bf16.msra.mxu0 %v517
        %542 = vmatprep.subr.bf16.mxu0 0
        %543 = vmatpush1.bf16.msra.mxu0 0
        %544 = vmatprep.subr.bf16.mxu0 0
        %545 = vmatpush1.bf16.msra.mxu0 0
        %546 = vmatprep.subr.bf16.mxu0 0
        %547 = vmatpush1.bf16.msra.mxu0 0
        %548 = vmatprep.subr.bf16.mxu0 0
        %549 = vmatpush1.bf16.msra.mxu0 0
        %550 = vmatprep.subr.bf16.mxu0 0
        %551 = vmatpush1.bf16.msra.mxu0 0
        %552 = vmatprep.subr.bf16.mxu0 0
        %553 = vmatpush1.bf16.msra.mxu0 0
        %554 = vmatprep.subr.bf16.mxu0 0
        %555 = vmatpush1.bf16.msra.mxu0 0
        %556 = vmatprep.subr.bf16.mxu0 0
        %557 = vmatpush1.bf16.msra.mxu0 0
        %558 = vmatprep.mubr.bf16.mxu0 0
        %559 = vmatmul.mubr.bf16.gmra.mrb[0].mxu0 %v423
        %v560 = vpop.f32.mrb[0].mxu0
        %v561 = vadd.f32 %v476, %v560
        %v562 = vpop.f32.mrb[0].mxu0
        %v563 = vpop.f32.mrb[0].mxu0
        %v564 = vadd.f32 %v476, %v563
        %v565 = vpop.f32.mrb[0].mxu0
        %566 = vmatprep.mubr.bf16.mxu0 0
        %567 = vmatmul.mubr.bf16.gmra.mrb[0].mxu0 %v424
        %v568 = vpop.f32.mrb[0].mxu0
        %v569 = vadd.f32 %v476, %v568
        %v570 = vpop.f32.mrb[0].mxu0
        %v571 = vpop.f32.mrb[0].mxu0
        %v572 = vadd.f32 %v476, %v571
        %v573 = vpop.f32.mrb[0].mxu0
        %574 = vmatprep.mubr.bf16.mxu0 0
        %575 = vmatmul.mubr.bf16.gmra.mrb[0].mxu0 %v425
        %v576 = vpop.f32.mrb[0].mxu0
        %v577 = vadd.f32 %v476, %v576
        %v578 = vpop.f32.mrb[0].mxu0
        %v579 = vpop.f32.mrb[0].mxu0
        %v580 = vadd.f32 %v476, %v579
        %v581 = vpop.f32.mrb[0].mxu0
        %582 = vmatprep.mubr.bf16.mxu0 0
        %583 = vmatmul.mubr.bf16.gmra.mrb[0].mxu0 %v426
        %v584 = vpop.f32.mrb[0].mxu0
        %v585 = vadd.f32 %v476, %v584
        %v586 = vpop.f32.mrb[0].mxu0
        %v587 = vpop.f32.mrb[0].mxu0
        %v588 = vadd.f32 %v476, %v587
        %v589 = vpop.f32.mrb[0].mxu0
        %590 = vmatprep.mubr.bf16.mxu0 0
        %591 = vmatmul.mubr.bf16.gmra.mrb[0].mxu0 %v427
        %v592 = vpop.f32.mrb[0].mxu0
        %v593 = vadd.f32 %v476, %v592
        %v594 = vpop.f32.mrb[0].mxu0
        %v595 = vpop.f32.mrb[0].mxu0
        %v596 = vadd.f32 %v476, %v595
        %v597 = vpop.f32.mrb[0].mxu0
        %598 = vmatprep.mubr.bf16.mxu0 0
        %599 = vmatmul.mubr.bf16.gmra.mrb[0].mxu0 %v428
        %v600 = vpop.f32.mrb[0].mxu0
        %v601 = vadd.f32 %v476, %v600
        %v602 = vpop.f32.mrb[0].mxu0
        %v603 = vpop.f32.mrb[0].mxu0
        %v604 = vadd.f32 %v476, %v603
        %v605 = vpop.f32.mrb[0].mxu0
        %606 = vmatprep.mubr.bf16.mxu0 0
        %607 = vmatmul.mubr.bf16.gmra.mrb[0].mxu0 %v429
        %v608 = vpop.f32.mrb[0].mxu0
        %v609 = vadd.f32 %v476, %v608
        %v610 = vpop.f32.mrb[0].mxu0
        %v611 = vpop.f32.mrb[0].mxu0
        %v612 = vadd.f32 %v476, %v611
        %v613 = vpop.f32.mrb[0].mxu0
        %614 = vmatprep.mubr.bf16.mxu0 0
        %615 = vmatmul.mubr.bf16.gmra.mrb[0].mxu0 %v430
        %v616 = vpop.f32.mrb[0].mxu0
        %v617 = vadd.f32 %v476, %v616
        %v618 = vpop.f32.mrb[0].mxu0
        %v619 = vpop.f32.mrb[0].mxu0
        %v620 = vadd.f32 %v476, %v619
        %v621 = vpop.f32.mrb[0].mxu0
        %622 = vmatprep.mubr.bf16.mxu0 0
        %623 = vmatmul.mubr.bf16.gmra.mrb[0].mxu0 %v431
        %v624 = vpop.f32.mrb[0].mxu0
        %v625 = vadd.f32 %v476, %v624
        %v626 = vpop.f32.mrb[0].mxu0
        %v627 = vpop.f32.mrb[0].mxu0
        %v628 = vadd.f32 %v476, %v627
        %v629 = vpop.f32.mrb[0].mxu0
        %630 = vmatprep.mubr.bf16.mxu0 0
        %631 = vmatmul.mubr.bf16.gmra.mrb[0].mxu0 %v432
        %v632 = vpop.f32.mrb[0].mxu0
        %v633 = vadd.f32 %v476, %v632
        %v634 = vpop.f32.mrb[0].mxu0
        %v635 = vpop.f32.mrb[0].mxu0
        %v636 = vadd.f32 %v476, %v635
        %v637 = vpop.f32.mrb[0].mxu0
        %638 = vmatprep.mubr.bf16.mxu0 0
        %639 = vmatmul.mubr.bf16.gmra.mrb[0].mxu0 %v433
        %v640 = vpop.f32.mrb[0].mxu0
        %v641 = vadd.f32 %v476, %v640
        %v642 = vpop.f32.mrb[0].mxu0
        %v643 = vpop.f32.mrb[0].mxu0
        %v644 = vadd.f32 %v476, %v643
        %v645 = vpop.f32.mrb[0].mxu0
        %646 = vmatprep.mubr.bf16.mxu0 0
        %647 = vmatmul.mubr.bf16.gmra.mrb[0].mxu0 %v434
        %v648 = vpop.f32.mrb[0].mxu0
        %v649 = vadd.f32 %v476, %v648
        %v650 = vpop.f32.mrb[0].mxu0
        %v651 = vpop.f32.mrb[0].mxu0
        %v652 = vadd.f32 %v476, %v651
        %v653 = vpop.f32.mrb[0].mxu0
        %654 = vmatprep.mubr.bf16.mxu0 0
        %655 = vmatmul.mubr.bf16.gmra.mrb[0].mxu0 %v435
        %v656 = vpop.f32.mrb[0].mxu0
        %v657 = vadd.f32 %v476, %v656
        %v658 = vpop.f32.mrb[0].mxu0
        %v659 = vpop.f32.mrb[0].mxu0
        %v660 = vadd.f32 %v476, %v659
        %v661 = vpop.f32.mrb[0].mxu0
        %662 = vmatprep.mubr.bf16.mxu0 0
        %663 = vmatmul.mubr.bf16.gmra.mrb[0].mxu0 %v436
        %v664 = vpop.f32.mrb[0].mxu0
        %v665 = vadd.f32 %v476, %v664
        %v666 = vpop.f32.mrb[0].mxu0
        %v667 = vpop.f32.mrb[0].mxu0
        %v668 = vadd.f32 %v476, %v667
        %v669 = vpop.f32.mrb[0].mxu0
        %670 = vmatprep.mubr.bf16.mxu0 0
        %671 = vmatmul.mubr.bf16.gmra.mrb[0].mxu0 %v437
        %v672 = vpop.f32.mrb[0].mxu0
        %v673 = vadd.f32 %v476, %v672
        %v674 = vpop.f32.mrb[0].mxu0
        %v675 = vpop.f32.mrb[0].mxu0
        %v676 = vadd.f32 %v476, %v675
        %v677 = vpop.f32.mrb[0].mxu0
        %678 = vmatprep.mubr.bf16.mxu0 0
        %679 = vmatmul.mubr.bf16.gmra.mrb[0].mxu0 %v438
        %v680 = vpop.f32.mrb[0].mxu0
        %v681 = vadd.f32 %v476, %v680
        %v682 = vpop.f32.mrb[0].mxu0
        %v683 = vpop.f32.mrb[0].mxu0
        %v684 = vadd.f32 %v476, %v683
        %v685 = vpop.f32.mrb[0].mxu0
        %686 = vmatprep.mubr.bf16.mxu0 0
        %687 = vmatmul.mubr.bf16.gmra.mrb[0].mxu0 %v439
        %v688 = vpop.f32.mrb[0].mxu0
        %v689 = vadd.f32 %v476, %v688
        %v690 = vpop.f32.mrb[0].mxu0
        %v691 = vpop.f32.mrb[0].mxu0
        %v692 = vadd.f32 %v476, %v691
        %v693 = vpop.f32.mrb[0].mxu0
        %694 = vmatprep.mubr.bf16.mxu0 0
        %695 = vmatmul.mubr.bf16.gmra.mrb[0].mxu0 %v440
        %v696 = vpop.f32.mrb[0].mxu0
        %v697 = vadd.f32 %v476, %v696
        %v698 = vpop.f32.mrb[0].mxu0
        %v699 = vpop.f32.mrb[0].mxu0
        %v700 = vadd.f32 %v476, %v699
        %v701 = vpop.f32.mrb[0].mxu0
        %702 = vmatprep.mubr.bf16.mxu0 0
        %703 = vmatmul.mubr.bf16.gmra.mrb[0].mxu0 %v441
        %v704 = vpop.f32.mrb[0].mxu0
        %v705 = vadd.f32 %v476, %v704
        %v706 = vpop.f32.mrb[0].mxu0
        %v707 = vpop.f32.mrb[0].mxu0
        %v708 = vadd.f32 %v476, %v707
        %v709 = vpop.f32.mrb[0].mxu0
        %710 = vmatprep.mubr.bf16.mxu0 0
        %711 = vmatmul.mubr.bf16.gmra.mrb[0].mxu0 %v442
        %v712 = vpop.f32.mrb[0].mxu0
        %v713 = vadd.f32 %v476, %v712
        %v714 = vpop.f32.mrb[0].mxu0
        %v715 = vpop.f32.mrb[0].mxu0
        %v716 = vadd.f32 %v476, %v715
        %v717 = vpop.f32.mrb[0].mxu0
        %718 = vmatprep.mubr.bf16.mxu0 0
        %719 = vmatmul.mubr.bf16.gmra.mrb[0].mxu0 %v443
        %v720 = vpop.f32.mrb[0].mxu0
        %v721 = vadd.f32 %v476, %v720
        %v722 = vpop.f32.mrb[0].mxu0
        %v723 = vpop.f32.mrb[0].mxu0
        %v724 = vadd.f32 %v476, %v723
        %v725 = vpop.f32.mrb[0].mxu0
        %726 = vmatprep.mubr.bf16.mxu0 0
        %727 = vmatmul.mubr.bf16.gmra.mrb[0].mxu0 %v444
        %v728 = vpop.f32.mrb[0].mxu0
        %v729 = vadd.f32 %v476, %v728
        %v730 = vpop.f32.mrb[0].mxu0
        %v731 = vpop.f32.mrb[0].mxu0
        %v732 = vadd.f32 %v476, %v731
        %v733 = vpop.f32.mrb[0].mxu0
        %734 = vmatprep.mubr.bf16.mxu0 0
        %735 = vmatmul.mubr.bf16.gmra.mrb[0].mxu0 %v445
        %v736 = vpop.f32.mrb[0].mxu0
        %v737 = vadd.f32 %v476, %v736
        %v738 = vpop.f32.mrb[0].mxu0
        %v739 = vpop.f32.mrb[0].mxu0
        %v740 = vadd.f32 %v476, %v739
        %v741 = vpop.f32.mrb[0].mxu0
        %742 = vmatprep.mubr.bf16.mxu0 0
        %743 = vmatmul.mubr.bf16.gmra.mrb[0].mxu0 %v446
        %v744 = vpop.f32.mrb[0].mxu0
        %v745 = vadd.f32 %v476, %v744
        %v746 = vpop.f32.mrb[0].mxu0
        %v747 = vpop.f32.mrb[0].mxu0
        %v748 = vadd.f32 %v476, %v747
        %v749 = vpop.f32.mrb[0].mxu0
        %750 = vmatprep.mubr.bf16.mxu0 0
        %751 = vmatmul.mubr.bf16.gmra.mrb[0].mxu0 %v447
        %v752 = vpop.f32.mrb[0].mxu0
        %v753 = vadd.f32 %v476, %v752
        %v754 = vpop.f32.mrb[0].mxu0
        %v755 = vpop.f32.mrb[0].mxu0
        %v756 = vadd.f32 %v476, %v755
        %v757 = vpop.f32.mrb[0].mxu0
        %758 = vmatprep.mubr.bf16.mxu0 0
        %759 = vmatmul.mubr.bf16.gmra.mrb[0].mxu0 %v448
        %v760 = vpop.f32.mrb[0].mxu0
        %v761 = vadd.f32 %v476, %v760
        %v762 = vpop.f32.mrb[0].mxu0
        %v763 = vpop.f32.mrb[0].mxu0
        %v764 = vadd.f32 %v476, %v763
        %v765 = vpop.f32.mrb[0].mxu0
        %766 = vmatprep.mubr.bf16.mxu0 0
        %767 = vmatmul.mubr.bf16.gmra.mrb[0].mxu0 %v449
        %v768 = vpop.f32.mrb[0].mxu0
        %v769 = vadd.f32 %v476, %v768
        %v770 = vpop.f32.mrb[0].mxu0
        %v771 = vpop.f32.mrb[0].mxu0
        %v772 = vadd.f32 %v476, %v771
        %v773 = vpop.f32.mrb[0].mxu0
        %774 = vmatprep.mubr.bf16.mxu0 0
        %775 = vmatmul.mubr.bf16.gmra.mrb[0].mxu0 %v450
        %v776 = vpop.f32.mrb[0].mxu0
        %v777 = vadd.f32 %v476, %v776
        %v778 = vpop.f32.mrb[0].mxu0
        %v779 = vpop.f32.mrb[0].mxu0
        %v780 = vadd.f32 %v476, %v779
        %v781 = vpop.f32.mrb[0].mxu0
        %782 = vmatprep.mubr.bf16.mxu0 0
        %783 = vmatmul.mubr.bf16.gmra.mrb[0].mxu0 %v451
        %v784 = vpop.f32.mrb[0].mxu0
        %v785 = vadd.f32 %v476, %v784
        %v786 = vpop.f32.mrb[0].mxu0
        %v787 = vpop.f32.mrb[0].mxu0
        %v788 = vadd.f32 %v476, %v787
        %v789 = vpop.f32.mrb[0].mxu0
        %790 = vmatprep.mubr.bf16.mxu0 0
        %791 = vmatmul.mubr.bf16.gmra.mrb[0].mxu0 %v452
        %v792 = vpop.f32.mrb[0].mxu0
        %v793 = vadd.f32 %v476, %v792
        %v794 = vpop.f32.mrb[0].mxu0
        %v795 = vpop.f32.mrb[0].mxu0
        %v796 = vadd.f32 %v476, %v795
        %v797 = vpop.f32.mrb[0].mxu0
        %798 = vmatprep.mubr.bf16.mxu0 0
        %799 = vmatmul.mubr.bf16.gmra.mrb[0].mxu0 %v453
        %v800 = vpop.f32.mrb[0].mxu0
        %v801 = vadd.f32 %v476, %v800
        %v802 = vpop.f32.mrb[0].mxu0
        %v803 = vpop.f32.mrb[0].mxu0
        %v804 = vadd.f32 %v476, %v803
        %v805 = vpop.f32.mrb[0].mxu0
        %806 = vmatprep.mubr.bf16.mxu0 0
        %807 = vmatmul.mubr.bf16.gmra.mrb[0].mxu0 %v454
        %v808 = vpop.f32.mrb[0].mxu0
        %v809 = vadd.f32 %v476, %v808
        %v810 = vpop.f32.mrb[0].mxu0
        %v811 = vpop.f32.mrb[0].mxu0
        %v812 = vadd.f32 %v476, %v811
        %v813 = vpop.f32.mrb[0].mxu0
        %814 = vdwg.mxu0
        %v815 = vmax.f32 %v561, 0.0
        %v816 = vmax.f32 %v564, 0.0
        %v817 = vmax.f32 %v569, 0.0
        %v818 = vmax.f32 %v572, 0.0
        %v819 = vmax.f32 %v577, 0.0
        %v820 = vmax.f32 %v580, 0.0
        %v821 = vmax.f32 %v585, 0.0
        %v822 = vmax.f32 %v588, 0.0
        %v823 = vmax.f32 %v593, 0.0
        %v824 = vmax.f32 %v596, 0.0
        %v825 = vmax.f32 %v601, 0.0
        %v826 = vmax.f32 %v604, 0.0
        %v827 = vmax.f32 %v609, 0.0
        %v828 = vmax.f32 %v612, 0.0
        %v829 = vmax.f32 %v617, 0.0
        %v830 = vmax.f32 %v620, 0.0
        %v831 = vmax.f32 %v625, 0.0
        %v832 = vmax.f32 %v628, 0.0
        %v833 = vmax.f32 %v633, 0.0
        %v834 = vmax.f32 %v636, 0.0
        %v835 = vmax.f32 %v641, 0.0
        %v836 = vmax.f32 %v644, 0.0
        %v837 = vmax.f32 %v649, 0.0
        %v838 = vmax.f32 %v652, 0.0
        %v839 = vmax.f32 %v657, 0.0
        %v840 = vmax.f32 %v660, 0.0
        %v841 = vmax.f32 %v665, 0.0
        %v842 = vmax.f32 %v668, 0.0
        %v843 = vmax.f32 %v673, 0.0
        %v844 = vmax.f32 %v676, 0.0
        %v845 = vmax.f32 %v681, 0.0
        %v846 = vmax.f32 %v684, 0.0
        %v847 = vmax.f32 %v689, 0.0
        %v848 = vmax.f32 %v692, 0.0
        %v849 = vmax.f32 %v697, 0.0
        %v850 = vmax.f32 %v700, 0.0
        %v851 = vmax.f32 %v705, 0.0
        %v852 = vmax.f32 %v708, 0.0
        %v853 = vmax.f32 %v713, 0.0
        %v854 = vmax.f32 %v716, 0.0
        %v855 = vmax.f32 %v721, 0.0
        %v856 = vmax.f32 %v724, 0.0
        %v857 = vmax.f32 %v729, 0.0
        %v858 = vmax.f32 %v732, 0.0
        %v859 = vmax.f32 %v737, 0.0
        %v860 = vmax.f32 %v740, 0.0
        %v861 = vmax.f32 %v745, 0.0
        %v862 = vmax.f32 %v748, 0.0
        %v863 = vmax.f32 %v753, 0.0
        %v864 = vmax.f32 %v756, 0.0
        %v865 = vmax.f32 %v761, 0.0
        %v866 = vmax.f32 %v764, 0.0
        %v867 = vmax.f32 %v769, 0.0
        %v868 = vmax.f32 %v772, 0.0
        %v869 = vmax.f32 %v777, 0.0
        %v870 = vmax.f32 %v780, 0.0
        %v871 = vmax.f32 %v785, 0.0
        %v872 = vmax.f32 %v788, 0.0
        %v873 = vmax.f32 %v793, 0.0
        %v874 = vmax.f32 %v796, 0.0
        %v875 = vmax.f32 %v801, 0.0
        %v876 = vmax.f32 %v804, 0.0
        %v877 = vmax.f32 %v809, 0.0
        %v878 = vmax.f32 %v812, 0.0
        %v879 = vpack.c.bf16 %v816, %v815
        %v880 = vpack.c.bf16 %v818, %v817
        %v881 = vpack.c.bf16 %v820, %v819
        %v882 = vpack.c.bf16 %v822, %v821
        %v883 = vpack.c.bf16 %v824, %v823
        %v884 = vpack.c.bf16 %v826, %v825
        %v885 = vpack.c.bf16 %v828, %v827
        %v886 = vpack.c.bf16 %v830, %v829
        %v887 = vpack.c.bf16 %v832, %v831
        %v888 = vpack.c.bf16 %v834, %v833
        %v889 = vpack.c.bf16 %v836, %v835
        %v890 = vpack.c.bf16 %v838, %v837
        %v891 = vpack.c.bf16 %v840, %v839
        %v892 = vpack.c.bf16 %v842, %v841
        %v893 = vpack.c.bf16 %v844, %v843
        %v894 = vpack.c.bf16 %v846, %v845
        %v895 = vpack.c.bf16 %v848, %v847
        %v896 = vpack.c.bf16 %v850, %v849
        %v897 = vpack.c.bf16 %v852, %v851
        %v898 = vpack.c.bf16 %v854, %v853
        %v899 = vpack.c.bf16 %v856, %v855
        %v900 = vpack.c.bf16 %v858, %v857
        %v901 = vpack.c.bf16 %v860, %v859
        %v902 = vpack.c.bf16 %v862, %v861
        %v903 = vpack.c.bf16 %v864, %v863
        %v904 = vpack.c.bf16 %v866, %v865
        %v905 = vpack.c.bf16 %v868, %v867
        %v906 = vpack.c.bf16 %v870, %v869
        %v907 = vpack.c.bf16 %v872, %v871
        %v908 = vpack.c.bf16 %v874, %v873
        %v909 = vpack.c.bf16 %v876, %v875
        %v910 = vpack.c.bf16 %v878, %v877
        %v911 = vld [vmem:[#allocation7] sm:$0xf]
        %v912 = vld [vmem:[#allocation7 + $0x4] sm:$0xf]
        %v913 = vld [vmem:[#allocation7 + $0x8] sm:$0xf]
        %v914 = vld [vmem:[#allocation7 + $0xc] sm:$0xf]
        %v915 = vld [vmem:[#allocation7 + $0x10] sm:$0xf]
        %v916 = vld [vmem:[#allocation7 + $0x14] sm:$0xf]
        %v917 = vld [vmem:[#allocation7 + $0x18] sm:$0xf]
        %v918 = vld [vmem:[#allocation7 + $0x1c] sm:$0xf]
        %v919 = vld [vmem:[#allocation7 + $0x20] sm:$0xf]
        %v920 = vld [vmem:[#allocation7 + $0x24] sm:$0xf]
        %v921 = vld [vmem:[#allocation7 + $0x28] sm:$0xf]
        %v922 = vld [vmem:[#allocation7 + $0x2c] sm:$0xf]
        %v923 = vld [vmem:[#allocation7 + $0x30] sm:$0xf]
        %v924 = vld [vmem:[#allocation7 + $0x34] sm:$0xf]
        %v925 = vld [vmem:[#allocation7 + $0x38] sm:$0xf]
        %v926 = vld [vmem:[#allocation7 + $0x3c] sm:$0xf]
        %v927 = vld [vmem:[%s4] sm:$0x1]
        %v929 = vlaneseq
        %v930 = vshrl.u32 %v929, 7
        %v931 = vsub.s32 0, %v930
        %v932 = vrot.slane %v927, %v931
        %v950 = vunpack.c.l.b16 %v911
        %v951 = vunpack.c.l.b16 %v912
        %v952 = vunpack.c.l.b16 %v913
        %v953 = vunpack.c.l.b16 %v914
        %v954 = vunpack.c.l.b16 %v915
        %v955 = vunpack.c.l.b16 %v916
        %v956 = vunpack.c.l.b16 %v917
        %v957 = vunpack.c.l.b16 %v918
        %v958 = vunpack.c.l.b16 %v919
        %v959 = vunpack.c.l.b16 %v920
        %v960 = vunpack.c.l.b16 %v921
        %v961 = vunpack.c.l.b16 %v922
        %v962 = vunpack.c.l.b16 %v923
        %v963 = vunpack.c.l.b16 %v924
        %v964 = vunpack.c.l.b16 %v925
        %v965 = vunpack.c.l.b16 %v926
        %v966 = vpack.c.b16 %v951, %v950
        %v967 = vpack.c.b16 %v953, %v952
        %v968 = vpack.c.b16 %v955, %v954
        %v969 = vpack.c.b16 %v957, %v956
        %v970 = vpack.c.b16 %v959, %v958
        %v971 = vpack.c.b16 %v961, %v960
        %v972 = vpack.c.b16 %v963, %v962
        %v973 = vpack.c.b16 %v965, %v964
        %982 = vmatprep.subr.bf16.mxu0 0
        %983 = vmatpush1.bf16.msra.mxu0 %v966
        %984 = vmatprep.subr.bf16.mxu0 0
        %985 = vmatpush1.bf16.msra.mxu0 %v967
        %986 = vmatprep.subr.bf16.mxu0 0
        %987 = vmatpush1.bf16.msra.mxu0 %v968
        %988 = vmatprep.subr.bf16.mxu0 0
        %989 = vmatpush1.bf16.msra.mxu0 %v969
        %990 = vmatprep.subr.bf16.mxu0 0
        %991 = vmatpush1.bf16.msra.mxu0 %v970
        %992 = vmatprep.subr.bf16.mxu0 0
        %993 = vmatpush1.bf16.msra.mxu0 %v971
        %994 = vmatprep.subr.bf16.mxu0 0
        %995 = vmatpush1.bf16.msra.mxu0 %v972
        %996 = vmatprep.subr.bf16.mxu0 0
        %997 = vmatpush1.bf16.msra.mxu0 %v973
        %998 = vmatprep.subr.bf16.mxu0 0
        %999 = vmatpush1.bf16.msra.mxu0 0
        %1000 = vmatprep.subr.bf16.mxu0 0
        %1001 = vmatpush1.bf16.msra.mxu0 0
        %1002 = vmatprep.subr.bf16.mxu0 0
        %1003 = vmatpush1.bf16.msra.mxu0 0
        %1004 = vmatprep.subr.bf16.mxu0 0
        %1005 = vmatpush1.bf16.msra.mxu0 0
        %1006 = vmatprep.subr.bf16.mxu0 0
        %1007 = vmatpush1.bf16.msra.mxu0 0
        %1008 = vmatprep.subr.bf16.mxu0 0
        %1009 = vmatpush1.bf16.msra.mxu0 0
        %1010 = vmatprep.subr.bf16.mxu0 0
        %1011 = vmatpush1.bf16.msra.mxu0 0
        %1012 = vmatprep.subr.bf16.mxu0 0
        %1013 = vmatpush1.bf16.msra.mxu0 0
        %1014 = vmatprep.mubr.bf16.mxu0 0
        %1015 = vmatmul.mubr.bf16.gmra.mrb[0].mxu0 %v879
        %v1016 = vpop.f32.mrb[0].mxu0
        %v1017 = vadd.f32 %v932, %v1016
        %v1018 = vpop.f32.mrb[0].mxu0
        %v1019 = vpop.f32.mrb[0].mxu0
        %v1020 = vadd.f32 %v932, %v1019
        %v1021 = vpop.f32.mrb[0].mxu0
        %1022 = vmatprep.mubr.bf16.mxu0 0
        %1023 = vmatmul.mubr.bf16.gmra.mrb[0].mxu0 %v880
        %v1024 = vpop.f32.mrb[0].mxu0
        %v1025 = vadd.f32 %v932, %v1024
        %v1026 = vpop.f32.mrb[0].mxu0
        %v1027 = vpop.f32.mrb[0].mxu0
        %v1028 = vadd.f32 %v932, %v1027
        %v1029 = vpop.f32.mrb[0].mxu0
        %1030 = vmatprep.mubr.bf16.mxu0 0
        %1031 = vmatmul.mubr.bf16.gmra.mrb[0].mxu0 %v881
        %v1032 = vpop.f32.mrb[0].mxu0
        %v1033 = vadd.f32 %v932, %v1032
        %v1034 = vpop.f32.mrb[0].mxu0
        %v1035 = vpop.f32.mrb[0].mxu0
        %v1036 = vadd.f32 %v932, %v1035
        %v1037 = vpop.f32.mrb[0].mxu0
        %1038 = vmatprep.mubr.bf16.mxu0 0
        %1039 = vmatmul.mubr.bf16.gmra.mrb[0].mxu0 %v882
        %v1040 = vpop.f32.mrb[0].mxu0
        %v1041 = vadd.f32 %v932, %v1040
        %v1042 = vpop.f32.mrb[0].mxu0
        %v1043 = vpop.f32.mrb[0].mxu0
        %v1044 = vadd.f32 %v932, %v1043
        %v1045 = vpop.f32.mrb[0].mxu0
        %1046 = vmatprep.mubr.bf16.mxu0 0
        %1047 = vmatmul.mubr.bf16.gmra.mrb[0].mxu0 %v883
        %v1048 = vpop.f32.mrb[0].mxu0
        %v1049 = vadd.f32 %v932, %v1048
        %v1050 = vpop.f32.mrb[0].mxu0
        %v1051 = vpop.f32.mrb[0].mxu0
        %v1052 = vadd.f32 %v932, %v1051
        %v1053 = vpop.f32.mrb[0].mxu0
        %1054 = vmatprep.mubr.bf16.mxu0 0
        %1055 = vmatmul.mubr.bf16.gmra.mrb[0].mxu0 %v884
        %v1056 = vpop.f32.mrb[0].mxu0
        %v1057 = vadd.f32 %v932, %v1056
        %v1058 = vpop.f32.mrb[0].mxu0
        %v1059 = vpop.f32.mrb[0].mxu0
        %v1060 = vadd.f32 %v932, %v1059
        %v1061 = vpop.f32.mrb[0].mxu0
        %1062 = vmatprep.mubr.bf16.mxu0 0
        %1063 = vmatmul.mubr.bf16.gmra.mrb[0].mxu0 %v885
        %v1064 = vpop.f32.mrb[0].mxu0
        %v1065 = vadd.f32 %v932, %v1064
        %v1066 = vpop.f32.mrb[0].mxu0
        %v1067 = vpop.f32.mrb[0].mxu0
        %v1068 = vadd.f32 %v932, %v1067
        %v1069 = vpop.f32.mrb[0].mxu0
        %1070 = vmatprep.mubr.bf16.mxu0 0
        %1071 = vmatmul.mubr.bf16.gmra.mrb[0].mxu0 %v886
        %v1072 = vpop.f32.mrb[0].mxu0
        %v1073 = vadd.f32 %v932, %v1072
        %v1074 = vpop.f32.mrb[0].mxu0
        %v1075 = vpop.f32.mrb[0].mxu0
        %v1076 = vadd.f32 %v932, %v1075
        %v1077 = vpop.f32.mrb[0].mxu0
        %1078 = vmatprep.mubr.bf16.mxu0 0
        %1079 = vmatmul.mubr.bf16.gmra.mrb[0].mxu0 %v887
        %v1080 = vpop.f32.mrb[0].mxu0
        %v1081 = vadd.f32 %v932, %v1080
        %v1082 = vpop.f32.mrb[0].mxu0
        %v1083 = vpop.f32.mrb[0].mxu0
        %v1084 = vadd.f32 %v932, %v1083
        %v1085 = vpop.f32.mrb[0].mxu0
        %1086 = vmatprep.mubr.bf16.mxu0 0
        %1087 = vmatmul.mubr.bf16.gmra.mrb[0].mxu0 %v888
        %v1088 = vpop.f32.mrb[0].mxu0
        %v1089 = vadd.f32 %v932, %v1088
        %v1090 = vpop.f32.mrb[0].mxu0
        %v1091 = vpop.f32.mrb[0].mxu0
        %v1092 = vadd.f32 %v932, %v1091
        %v1093 = vpop.f32.mrb[0].mxu0
        %1094 = vmatprep.mubr.bf16.mxu0 0
        %1095 = vmatmul.mubr.bf16.gmra.mrb[0].mxu0 %v889
        %v1096 = vpop.f32.mrb[0].mxu0
        %v1097 = vadd.f32 %v932, %v1096
        %v1098 = vpop.f32.mrb[0].mxu0
        %v1099 = vpop.f32.mrb[0].mxu0
        %v1100 = vadd.f32 %v932, %v1099
        %v1101 = vpop.f32.mrb[0].mxu0
        %1102 = vmatprep.mubr.bf16.mxu0 0
        %1103 = vmatmul.mubr.bf16.gmra.mrb[0].mxu0 %v890
        %v1104 = vpop.f32.mrb[0].mxu0
        %v1105 = vadd.f32 %v932, %v1104
        %v1106 = vpop.f32.mrb[0].mxu0
        %v1107 = vpop.f32.mrb[0].mxu0
        %v1108 = vadd.f32 %v932, %v1107
        %v1109 = vpop.f32.mrb[0].mxu0
        %1110 = vmatprep.mubr.bf16.mxu0 0
        %1111 = vmatmul.mubr.bf16.gmra.mrb[0].mxu0 %v891
        %v1112 = vpop.f32.mrb[0].mxu0
        %v1113 = vadd.f32 %v932, %v1112
        %v1114 = vpop.f32.mrb[0].mxu0
        %v1115 = vpop.f32.mrb[0].mxu0
        %v1116 = vadd.f32 %v932, %v1115
        %v1117 = vpop.f32.mrb[0].mxu0
        %1118 = vmatprep.mubr.bf16.mxu0 0
        %1119 = vmatmul.mubr.bf16.gmra.mrb[0].mxu0 %v892
        %v1120 = vpop.f32.mrb[0].mxu0
        %v1121 = vadd.f32 %v932, %v1120
        %v1122 = vpop.f32.mrb[0].mxu0
        %v1123 = vpop.f32.mrb[0].mxu0
        %v1124 = vadd.f32 %v932, %v1123
        %v1125 = vpop.f32.mrb[0].mxu0
        %1126 = vmatprep.mubr.bf16.mxu0 0
        %1127 = vmatmul.mubr.bf16.gmra.mrb[0].mxu0 %v893
        %v1128 = vpop.f32.mrb[0].mxu0
        %v1129 = vadd.f32 %v932, %v1128
        %v1130 = vpop.f32.mrb[0].mxu0
        %v1131 = vpop.f32.mrb[0].mxu0
        %v1132 = vadd.f32 %v932, %v1131
        %v1133 = vpop.f32.mrb[0].mxu0
        %1134 = vmatprep.mubr.bf16.mxu0 0
        %1135 = vmatmul.mubr.bf16.gmra.mrb[0].mxu0 %v894
        %v1136 = vpop.f32.mrb[0].mxu0
        %v1137 = vadd.f32 %v932, %v1136
        %v1138 = vpop.f32.mrb[0].mxu0
        %v1139 = vpop.f32.mrb[0].mxu0
        %v1140 = vadd.f32 %v932, %v1139
        %v1141 = vpop.f32.mrb[0].mxu0
        %1142 = vmatprep.mubr.bf16.mxu0 0
        %1143 = vmatmul.mubr.bf16.gmra.mrb[0].mxu0 %v895
        %v1144 = vpop.f32.mrb[0].mxu0
        %v1145 = vadd.f32 %v932, %v1144
        %v1146 = vpop.f32.mrb[0].mxu0
        %v1147 = vpop.f32.mrb[0].mxu0
        %v1148 = vadd.f32 %v932, %v1147
        %v1149 = vpop.f32.mrb[0].mxu0
        %1150 = vmatprep.mubr.bf16.mxu0 0
        %1151 = vmatmul.mubr.bf16.gmra.mrb[0].mxu0 %v896
        %v1152 = vpop.f32.mrb[0].mxu0
        %v1153 = vadd.f32 %v932, %v1152
        %v1154 = vpop.f32.mrb[0].mxu0
        %v1155 = vpop.f32.mrb[0].mxu0
        %v1156 = vadd.f32 %v932, %v1155
        %v1157 = vpop.f32.mrb[0].mxu0
        %1158 = vmatprep.mubr.bf16.mxu0 0
        %1159 = vmatmul.mubr.bf16.gmra.mrb[0].mxu0 %v897
        %v1160 = vpop.f32.mrb[0].mxu0
        %v1161 = vadd.f32 %v932, %v1160
        %v1162 = vpop.f32.mrb[0].mxu0
        %v1163 = vpop.f32.mrb[0].mxu0
        %v1164 = vadd.f32 %v932, %v1163
        %v1165 = vpop.f32.mrb[0].mxu0
        %1166 = vmatprep.mubr.bf16.mxu0 0
        %1167 = vmatmul.mubr.bf16.gmra.mrb[0].mxu0 %v898
        %v1168 = vpop.f32.mrb[0].mxu0
        %v1169 = vadd.f32 %v932, %v1168
        %v1170 = vpop.f32.mrb[0].mxu0
        %v1171 = vpop.f32.mrb[0].mxu0
        %v1172 = vadd.f32 %v932, %v1171
        %v1173 = vpop.f32.mrb[0].mxu0
        %1174 = vmatprep.mubr.bf16.mxu0 0
        %1175 = vmatmul.mubr.bf16.gmra.mrb[0].mxu0 %v899
        %v1176 = vpop.f32.mrb[0].mxu0
        %v1177 = vadd.f32 %v932, %v1176
        %v1178 = vpop.f32.mrb[0].mxu0
        %v1179 = vpop.f32.mrb[0].mxu0
        %v1180 = vadd.f32 %v932, %v1179
        %v1181 = vpop.f32.mrb[0].mxu0
        %1182 = vmatprep.mubr.bf16.mxu0 0
        %1183 = vmatmul.mubr.bf16.gmra.mrb[0].mxu0 %v900
        %v1184 = vpop.f32.mrb[0].mxu0
        %v1185 = vadd.f32 %v932, %v1184
        %v1186 = vpop.f32.mrb[0].mxu0
        %v1187 = vpop.f32.mrb[0].mxu0
        %v1188 = vadd.f32 %v932, %v1187
        %v1189 = vpop.f32.mrb[0].mxu0
        %1190 = vmatprep.mubr.bf16.mxu0 0
        %1191 = vmatmul.mubr.bf16.gmra.mrb[0].mxu0 %v901
        %v1192 = vpop.f32.mrb[0].mxu0
        %v1193 = vadd.f32 %v932, %v1192
        %v1194 = vpop.f32.mrb[0].mxu0
        %v1195 = vpop.f32.mrb[0].mxu0
        %v1196 = vadd.f32 %v932, %v1195
        %v1197 = vpop.f32.mrb[0].mxu0
        %1198 = vmatprep.mubr.bf16.mxu0 0
        %1199 = vmatmul.mubr.bf16.gmra.mrb[0].mxu0 %v902
        %v1200 = vpop.f32.mrb[0].mxu0
        %v1201 = vadd.f32 %v932, %v1200
        %v1202 = vpop.f32.mrb[0].mxu0
        %v1203 = vpop.f32.mrb[0].mxu0
        %v1204 = vadd.f32 %v932, %v1203
        %v1205 = vpop.f32.mrb[0].mxu0
        %1206 = vmatprep.mubr.bf16.mxu0 0
        %1207 = vmatmul.mubr.bf16.gmra.mrb[0].mxu0 %v903
        %v1208 = vpop.f32.mrb[0].mxu0
        %v1209 = vadd.f32 %v932, %v1208
        %v1210 = vpop.f32.mrb[0].mxu0
        %v1211 = vpop.f32.mrb[0].mxu0
        %v1212 = vadd.f32 %v932, %v1211
        %v1213 = vpop.f32.mrb[0].mxu0
        %1214 = vmatprep.mubr.bf16.mxu0 0
        %1215 = vmatmul.mubr.bf16.gmra.mrb[0].mxu0 %v904
        %v1216 = vpop.f32.mrb[0].mxu0
        %v1217 = vadd.f32 %v932, %v1216
        %v1218 = vpop.f32.mrb[0].mxu0
        %v1219 = vpop.f32.mrb[0].mxu0
        %v1220 = vadd.f32 %v932, %v1219
        %v1221 = vpop.f32.mrb[0].mxu0
        %1222 = vmatprep.mubr.bf16.mxu0 0
        %1223 = vmatmul.mubr.bf16.gmra.mrb[0].mxu0 %v905
        %v1224 = vpop.f32.mrb[0].mxu0
        %v1225 = vadd.f32 %v932, %v1224
        %v1226 = vpop.f32.mrb[0].mxu0
        %v1227 = vpop.f32.mrb[0].mxu0
        %v1228 = vadd.f32 %v932, %v1227
        %v1229 = vpop.f32.mrb[0].mxu0
        %1230 = vmatprep.mubr.bf16.mxu0 0
        %1231 = vmatmul.mubr.bf16.gmra.mrb[0].mxu0 %v906
        %v1232 = vpop.f32.mrb[0].mxu0
        %v1233 = vadd.f32 %v932, %v1232
        %v1234 = vpop.f32.mrb[0].mxu0
        %v1235 = vpop.f32.mrb[0].mxu0
        %v1236 = vadd.f32 %v932, %v1235
        %v1237 = vpop.f32.mrb[0].mxu0
        %1238 = vmatprep.mubr.bf16.mxu0 0
        %1239 = vmatmul.mubr.bf16.gmra.mrb[0].mxu0 %v907
        %v1240 = vpop.f32.mrb[0].mxu0
        %v1241 = vadd.f32 %v932, %v1240
        %v1242 = vpop.f32.mrb[0].mxu0
        %v1243 = vpop.f32.mrb[0].mxu0
        %v1244 = vadd.f32 %v932, %v1243
        %v1245 = vpop.f32.mrb[0].mxu0
        %1246 = vmatprep.mubr.bf16.mxu0 0
        %1247 = vmatmul.mubr.bf16.gmra.mrb[0].mxu0 %v908
        %v1248 = vpop.f32.mrb[0].mxu0
        %v1249 = vadd.f32 %v932, %v1248
        %v1250 = vpop.f32.mrb[0].mxu0
        %v1251 = vpop.f32.mrb[0].mxu0
        %v1252 = vadd.f32 %v932, %v1251
        %v1253 = vpop.f32.mrb[0].mxu0
        %1254 = vmatprep.mubr.bf16.mxu0 0
        %1255 = vmatmul.mubr.bf16.gmra.mrb[0].mxu0 %v909
        %v1256 = vpop.f32.mrb[0].mxu0
        %v1257 = vadd.f32 %v932, %v1256
        %v1258 = vpop.f32.mrb[0].mxu0
        %v1259 = vpop.f32.mrb[0].mxu0
        %v1260 = vadd.f32 %v932, %v1259
        %v1261 = vpop.f32.mrb[0].mxu0
        %1262 = vmatprep.mubr.bf16.mxu0 0
        %1263 = vmatmul.mubr.bf16.gmra.mrb[0].mxu0 %v910
        %v1264 = vpop.f32.mrb[0].mxu0
        %v1265 = vadd.f32 %v932, %v1264
        %v1266 = vpop.f32.mrb[0].mxu0
        %v1267 = vpop.f32.mrb[0].mxu0
        %v1268 = vadd.f32 %v932, %v1267
        %v1269 = vpop.f32.mrb[0].mxu0
        %1270 = vdwg.mxu0
        %v1271 = vmax.f32 %v1017, 0.0
        %v1272 = vmax.f32 %v1020, 0.0
        %v1273 = vmax.f32 %v1025, 0.0
        %v1274 = vmax.f32 %v1028, 0.0
        %v1275 = vmax.f32 %v1033, 0.0
        %v1276 = vmax.f32 %v1036, 0.0
        %v1277 = vmax.f32 %v1041, 0.0
        %v1278 = vmax.f32 %v1044, 0.0
        %v1279 = vmax.f32 %v1049, 0.0
        %v1280 = vmax.f32 %v1052, 0.0
        %v1281 = vmax.f32 %v1057, 0.0
        %v1282 = vmax.f32 %v1060, 0.0
        %v1283 = vmax.f32 %v1065, 0.0
        %v1284 = vmax.f32 %v1068, 0.0
        %v1285 = vmax.f32 %v1073, 0.0
        %v1286 = vmax.f32 %v1076, 0.0
        %v1287 = vmax.f32 %v1081, 0.0
        %v1288 = vmax.f32 %v1084, 0.0
        %v1289 = vmax.f32 %v1089, 0.0
        %v1290 = vmax.f32 %v1092, 0.0
        %v1291 = vmax.f32 %v1097, 0.0
        %v1292 = vmax.f32 %v1100, 0.0
        %v1293 = vmax.f32 %v1105, 0.0
        %v1294 = vmax.f32 %v1108, 0.0
        %v1295 = vmax.f32 %v1113, 0.0
        %v1296 = vmax.f32 %v1116, 0.0
        %v1297 = vmax.f32 %v1121, 0.0
        %v1298 = vmax.f32 %v1124, 0.0
        %v1299 = vmax.f32 %v1129, 0.0
        %v1300 = vmax.f32 %v1132, 0.0
        %v1301 = vmax.f32 %v1137, 0.0
        %v1302 = vmax.f32 %v1140, 0.0
        %v1303 = vmax.f32 %v1145, 0.0
        %v1304 = vmax.f32 %v1148, 0.0
        %v1305 = vmax.f32 %v1153, 0.0
        %v1306 = vmax.f32 %v1156, 0.0
        %v1307 = vmax.f32 %v1161, 0.0
        %v1308 = vmax.f32 %v1164, 0.0
        %v1309 = vmax.f32 %v1169, 0.0
        %v1310 = vmax.f32 %v1172, 0.0
        %v1311 = vmax.f32 %v1177, 0.0
        %v1312 = vmax.f32 %v1180, 0.0
        %v1313 = vmax.f32 %v1185, 0.0
        %v1314 = vmax.f32 %v1188, 0.0
        %v1315 = vmax.f32 %v1193, 0.0
        %v1316 = vmax.f32 %v1196, 0.0
        %v1317 = vmax.f32 %v1201, 0.0
        %v1318 = vmax.f32 %v1204, 0.0
        %v1319 = vmax.f32 %v1209, 0.0
        %v1320 = vmax.f32 %v1212, 0.0
        %v1321 = vmax.f32 %v1217, 0.0
        %v1322 = vmax.f32 %v1220, 0.0
        %v1323 = vmax.f32 %v1225, 0.0
        %v1324 = vmax.f32 %v1228, 0.0
        %v1325 = vmax.f32 %v1233, 0.0
        %v1326 = vmax.f32 %v1236, 0.0
        %v1327 = vmax.f32 %v1241, 0.0
        %v1328 = vmax.f32 %v1244, 0.0
        %v1329 = vmax.f32 %v1249, 0.0
        %v1330 = vmax.f32 %v1252, 0.0
        %v1331 = vmax.f32 %v1257, 0.0
        %v1332 = vmax.f32 %v1260, 0.0
        %v1333 = vmax.f32 %v1265, 0.0
        %v1334 = vmax.f32 %v1268, 0.0
        %v1335 = vpack.c.bf16 %v1272, %v1271
        %v1336 = vpack.c.bf16 %v1274, %v1273
        %v1337 = vpack.c.bf16 %v1276, %v1275
        %v1338 = vpack.c.bf16 %v1278, %v1277
        %v1339 = vpack.c.bf16 %v1280, %v1279
        %v1340 = vpack.c.bf16 %v1282, %v1281
        %v1341 = vpack.c.bf16 %v1284, %v1283
        %v1342 = vpack.c.bf16 %v1286, %v1285
        %v1343 = vpack.c.bf16 %v1288, %v1287
        %v1344 = vpack.c.bf16 %v1290, %v1289
        %v1345 = vpack.c.bf16 %v1292, %v1291
        %v1346 = vpack.c.bf16 %v1294, %v1293
        %v1347 = vpack.c.bf16 %v1296, %v1295
        %v1348 = vpack.c.bf16 %v1298, %v1297
        %v1349 = vpack.c.bf16 %v1300, %v1299
        %v1350 = vpack.c.bf16 %v1302, %v1301
        %v1351 = vpack.c.bf16 %v1304, %v1303
        %v1352 = vpack.c.bf16 %v1306, %v1305
        %v1353 = vpack.c.bf16 %v1308, %v1307
        %v1354 = vpack.c.bf16 %v1310, %v1309
        %v1355 = vpack.c.bf16 %v1312, %v1311
        %v1356 = vpack.c.bf16 %v1314, %v1313
        %v1357 = vpack.c.bf16 %v1316, %v1315
        %v1358 = vpack.c.bf16 %v1318, %v1317
        %v1359 = vpack.c.bf16 %v1320, %v1319
        %v1360 = vpack.c.bf16 %v1322, %v1321
        %v1361 = vpack.c.bf16 %v1324, %v1323
        %v1362 = vpack.c.bf16 %v1326, %v1325
        %v1363 = vpack.c.bf16 %v1328, %v1327
        %v1364 = vpack.c.bf16 %v1330, %v1329
        %v1365 = vpack.c.bf16 %v1332, %v1331
        %v1366 = vpack.c.bf16 %v1334, %v1333
        %v1367 = vld [vmem:[#allocation8] sm:$0xff]
        %v1368 = vld [vmem:[#allocation8 + $0x8] sm:$0xff]
        %v1369 = vld [vmem:[#allocation8 + $0x10] sm:$0xff]
        %v1370 = vld [vmem:[#allocation8 + $0x18] sm:$0xff]
        %v1371 = vld [vmem:[#allocation8 + $0x20] sm:$0xff]
        %v1372 = vld [vmem:[#allocation8 + $0x28] sm:$0xff]
        %v1373 = vld [vmem:[#allocation8 + $0x30] sm:$0xff]
        %v1374 = vld [vmem:[#allocation8 + $0x38] sm:$0xff]
        %v1375 = vld [vmem:[#allocation8 + $0x40] sm:$0xff]
        %v1376 = vld [vmem:[#allocation8 + $0x48] sm:$0xff]
        %v1377 = vld [vmem:[#allocation8 + $0x50] sm:$0xff]
        %v1378 = vld [vmem:[#allocation8 + $0x58] sm:$0xff]
        %v1379 = vld [vmem:[#allocation8 + $0x60] sm:$0xff]
        %v1380 = vld [vmem:[#allocation8 + $0x68] sm:$0xff]
        %v1381 = vld [vmem:[#allocation8 + $0x70] sm:$0xff]
        %v1382 = vld [vmem:[#allocation8 + $0x78] sm:$0xff]
        %v1383 = vld [vmem:[%s6] sm:$0x3]
        %v1385 = vlaneseq
        %v1386 = vshrl.u32 %v1385, 7
        %v1387 = vsub.s32 0, %v1386
        %v1388 = vrot.slane %v1383, %v1387
        %v1389 = vlaneseq
        %v1390 = vshrl.u32 %v1389, 7
        %v1391 = vsub.s32 1, %v1390
        %v1392 = vrot.slane %v1383, %v1391
        %v1411 = vunpack.c.l.b16 %v1367
        %v1412 = vunpack.c.h.b16 %v1367
        %v1413 = vunpack.c.l.b16 %v1368
        %v1414 = vunpack.c.h.b16 %v1368
        %v1415 = vunpack.c.l.b16 %v1369
        %v1416 = vunpack.c.h.b16 %v1369
        %v1417 = vunpack.c.l.b16 %v1370
        %v1418 = vunpack.c.h.b16 %v1370
        %v1419 = vunpack.c.l.b16 %v1371
        %v1420 = vunpack.c.h.b16 %v1371
        %v1421 = vunpack.c.l.b16 %v1372
        %v1422 = vunpack.c.h.b16 %v1372
        %v1423 = vunpack.c.l.b16 %v1373
        %v1424 = vunpack.c.h.b16 %v1373
        %v1425 = vunpack.c.l.b16 %v1374
        %v1426 = vunpack.c.h.b16 %v1374
        %v1427 = vunpack.c.l.b16 %v1375
        %v1428 = vunpack.c.h.b16 %v1375
        %v1429 = vunpack.c.l.b16 %v1376
        %v1430 = vunpack.c.h.b16 %v1376
        %v1431 = vunpack.c.l.b16 %v1377
        %v1432 = vunpack.c.h.b16 %v1377
        %v1433 = vunpack.c.l.b16 %v1378
        %v1434 = vunpack.c.h.b16 %v1378
        %v1435 = vunpack.c.l.b16 %v1379
        %v1436 = vunpack.c.h.b16 %v1379
        %v1437 = vunpack.c.l.b16 %v1380
        %v1438 = vunpack.c.h.b16 %v1380
        %v1439 = vunpack.c.l.b16 %v1381
        %v1440 = vunpack.c.h.b16 %v1381
        %v1441 = vunpack.c.l.b16 %v1382
        %v1442 = vunpack.c.h.b16 %v1382
        %v1443 = vpack.c.b16 %v1413, %v1411
        %v1444 = vpack.c.b16 %v1414, %v1412
        %v1445 = vpack.c.b16 %v1417, %v1415
        %v1446 = vpack.c.b16 %v1418, %v1416
        %v1447 = vpack.c.b16 %v1421, %v1419
        %v1448 = vpack.c.b16 %v1422, %v1420
        %v1449 = vpack.c.b16 %v1425, %v1423
        %v1450 = vpack.c.b16 %v1426, %v1424
        %v1451 = vpack.c.b16 %v1429, %v1427
        %v1452 = vpack.c.b16 %v1430, %v1428
        %v1453 = vpack.c.b16 %v1433, %v1431
        %v1454 = vpack.c.b16 %v1434, %v1432
        %v1455 = vpack.c.b16 %v1437, %v1435
        %v1456 = vpack.c.b16 %v1438, %v1436
        %v1457 = vpack.c.b16 %v1441, %v1439
        %v1458 = vpack.c.b16 %v1442, %v1440
        %1475 = vmatprep.subr.bf16.mxu0 %v1444
        %1476 = vmatpush1.bf16.msra.mxu0 %v1443
        %1477 = vmatprep.subr.bf16.mxu0 %v1446
        %1478 = vmatpush1.bf16.msra.mxu0 %v1445
        %1479 = vmatprep.subr.bf16.mxu0 %v1448
        %1480 = vmatpush1.bf16.msra.mxu0 %v1447
        %1481 = vmatprep.subr.bf16.mxu0 %v1450
        %1482 = vmatpush1.bf16.msra.mxu0 %v1449
        %1483 = vmatprep.subr.bf16.mxu0 %v1452
        %1484 = vmatpush1.bf16.msra.mxu0 %v1451
        %1485 = vmatprep.subr.bf16.mxu0 %v1454
        %1486 = vmatpush1.bf16.msra.mxu0 %v1453
        %1487 = vmatprep.subr.bf16.mxu0 %v1456
        %1488 = vmatpush1.bf16.msra.mxu0 %v1455
        %1489 = vmatprep.subr.bf16.mxu0 %v1458
        %1490 = vmatpush1.bf16.msra.mxu0 %v1457
        %1491 = vmatprep.subr.bf16.mxu0 0
        %1492 = vmatpush1.bf16.msra.mxu0 0
        %1493 = vmatprep.subr.bf16.mxu0 0
        %1494 = vmatpush1.bf16.msra.mxu0 0
        %1495 = vmatprep.subr.bf16.mxu0 0
        %1496 = vmatpush1.bf16.msra.mxu0 0
        %1497 = vmatprep.subr.bf16.mxu0 0
        %1498 = vmatpush1.bf16.msra.mxu0 0
        %1499 = vmatprep.subr.bf16.mxu0 0
        %1500 = vmatpush1.bf16.msra.mxu0 0
        %1501 = vmatprep.subr.bf16.mxu0 0
        %1502 = vmatpush1.bf16.msra.mxu0 0
        %1503 = vmatprep.subr.bf16.mxu0 0
        %1504 = vmatpush1.bf16.msra.mxu0 0
        %1505 = vmatprep.subr.bf16.mxu0 0
        %1506 = vmatpush1.bf16.msra.mxu0 0
        %1507 = vmatprep.mubr.bf16.mxu0 0
        %1508 = vmatmul.mubr.bf16.gmra.mrb[0].mxu0 %v1335
        %v1509 = vpop.f32.mrb[0].mxu0
        %v1510 = vadd.f32 %v1388, %v1509
        %v1511 = vpop.f32.mrb[0].mxu0
        %v1512 = vadd.f32 %v1392, %v1511
        %v1513 = vpop.f32.mrb[0].mxu0
        %v1514 = vadd.f32 %v1388, %v1513
        %v1515 = vpop.f32.mrb[0].mxu0
        %v1516 = vadd.f32 %v1392, %v1515
        %1517 = vmatprep.mubr.bf16.mxu0 0
        %1518 = vmatmul.mubr.bf16.gmra.mrb[0].mxu0 %v1336
        %v1519 = vpop.f32.mrb[0].mxu0
        %v1520 = vadd.f32 %v1388, %v1519
        %v1521 = vpop.f32.mrb[0].mxu0
        %v1522 = vadd.f32 %v1392, %v1521
        %v1523 = vpop.f32.mrb[0].mxu0
        %v1524 = vadd.f32 %v1388, %v1523
        %v1525 = vpop.f32.mrb[0].mxu0
        %v1526 = vadd.f32 %v1392, %v1525
        %1527 = vmatprep.mubr.bf16.mxu0 0
        %1528 = vmatmul.mubr.bf16.gmra.mrb[0].mxu0 %v1337
        %v1529 = vpop.f32.mrb[0].mxu0
        %v1530 = vadd.f32 %v1388, %v1529
        %v1531 = vpop.f32.mrb[0].mxu0
        %v1532 = vadd.f32 %v1392, %v1531
        %v1533 = vpop.f32.mrb[0].mxu0
        %v1534 = vadd.f32 %v1388, %v1533
        %v1535 = vpop.f32.mrb[0].mxu0
        %v1536 = vadd.f32 %v1392, %v1535
        %1537 = vmatprep.mubr.bf16.mxu0 0
        %1538 = vmatmul.mubr.bf16.gmra.mrb[0].mxu0 %v1338
        %v1539 = vpop.f32.mrb[0].mxu0
        %v1540 = vadd.f32 %v1388, %v1539
        %v1541 = vpop.f32.mrb[0].mxu0
        %v1542 = vadd.f32 %v1392, %v1541
        %v1543 = vpop.f32.mrb[0].mxu0
        %v1544 = vadd.f32 %v1388, %v1543
        %v1545 = vpop.f32.mrb[0].mxu0
        %v1546 = vadd.f32 %v1392, %v1545
        %1547 = vmatprep.mubr.bf16.mxu0 0
        %1548 = vmatmul.mubr.bf16.gmra.mrb[0].mxu0 %v1339
        %v1549 = vpop.f32.mrb[0].mxu0
        %v1550 = vadd.f32 %v1388, %v1549
        %v1551 = vpop.f32.mrb[0].mxu0
        %v1552 = vadd.f32 %v1392, %v1551
        %v1553 = vpop.f32.mrb[0].mxu0
        %v1554 = vadd.f32 %v1388, %v1553
        %v1555 = vpop.f32.mrb[0].mxu0
        %v1556 = vadd.f32 %v1392, %v1555
        %1557 = vmatprep.mubr.bf16.mxu0 0
        %1558 = vmatmul.mubr.bf16.gmra.mrb[0].mxu0 %v1340
        %v1559 = vpop.f32.mrb[0].mxu0
        %v1560 = vadd.f32 %v1388, %v1559
        %v1561 = vpop.f32.mrb[0].mxu0
        %v1562 = vadd.f32 %v1392, %v1561
        %v1563 = vpop.f32.mrb[0].mxu0
        %v1564 = vadd.f32 %v1388, %v1563
        %v1565 = vpop.f32.mrb[0].mxu0
        %v1566 = vadd.f32 %v1392, %v1565
        %1567 = vmatprep.mubr.bf16.mxu0 0
        %1568 = vmatmul.mubr.bf16.gmra.mrb[0].mxu0 %v1341
        %v1569 = vpop.f32.mrb[0].mxu0
        %v1570 = vadd.f32 %v1388, %v1569
        %v1571 = vpop.f32.mrb[0].mxu0
        %v1572 = vadd.f32 %v1392, %v1571
        %v1573 = vpop.f32.mrb[0].mxu0
        %v1574 = vadd.f32 %v1388, %v1573
        %v1575 = vpop.f32.mrb[0].mxu0
        %v1576 = vadd.f32 %v1392, %v1575
        %1577 = vmatprep.mubr.bf16.mxu0 0
        %1578 = vmatmul.mubr.bf16.gmra.mrb[0].mxu0 %v1342
        %v1579 = vpop.f32.mrb[0].mxu0
        %v1580 = vadd.f32 %v1388, %v1579
        %v1581 = vpop.f32.mrb[0].mxu0
        %v1582 = vadd.f32 %v1392, %v1581
        %v1583 = vpop.f32.mrb[0].mxu0
        %v1584 = vadd.f32 %v1388, %v1583
        %v1585 = vpop.f32.mrb[0].mxu0
        %v1586 = vadd.f32 %v1392, %v1585
        %1587 = vmatprep.mubr.bf16.mxu0 0
        %1588 = vmatmul.mubr.bf16.gmra.mrb[0].mxu0 %v1343
        %v1589 = vpop.f32.mrb[0].mxu0
        %v1590 = vadd.f32 %v1388, %v1589
        %v1591 = vpop.f32.mrb[0].mxu0
        %v1592 = vadd.f32 %v1392, %v1591
        %v1593 = vpop.f32.mrb[0].mxu0
        %v1594 = vadd.f32 %v1388, %v1593
        %v1595 = vpop.f32.mrb[0].mxu0
        %v1596 = vadd.f32 %v1392, %v1595
        %1597 = vmatprep.mubr.bf16.mxu0 0
        %1598 = vmatmul.mubr.bf16.gmra.mrb[0].mxu0 %v1344
        %v1599 = vpop.f32.mrb[0].mxu0
        %v1600 = vadd.f32 %v1388, %v1599
        %v1601 = vpop.f32.mrb[0].mxu0
        %v1602 = vadd.f32 %v1392, %v1601
        %v1603 = vpop.f32.mrb[0].mxu0
        %v1604 = vadd.f32 %v1388, %v1603
        %v1605 = vpop.f32.mrb[0].mxu0
        %v1606 = vadd.f32 %v1392, %v1605
        %1607 = vmatprep.mubr.bf16.mxu0 0
        %1608 = vmatmul.mubr.bf16.gmra.mrb[0].mxu0 %v1345
        %v1609 = vpop.f32.mrb[0].mxu0
        %v1610 = vadd.f32 %v1388, %v1609
        %v1611 = vpop.f32.mrb[0].mxu0
        %v1612 = vadd.f32 %v1392, %v1611
        %v1613 = vpop.f32.mrb[0].mxu0
        %v1614 = vadd.f32 %v1388, %v1613
        %v1615 = vpop.f32.mrb[0].mxu0
        %v1616 = vadd.f32 %v1392, %v1615
        %1617 = vmatprep.mubr.bf16.mxu0 0
        %1618 = vmatmul.mubr.bf16.gmra.mrb[0].mxu0 %v1346
        %v1619 = vpop.f32.mrb[0].mxu0
        %v1620 = vadd.f32 %v1388, %v1619
        %v1621 = vpop.f32.mrb[0].mxu0
        %v1622 = vadd.f32 %v1392, %v1621
        %v1623 = vpop.f32.mrb[0].mxu0
        %v1624 = vadd.f32 %v1388, %v1623
        %v1625 = vpop.f32.mrb[0].mxu0
        %v1626 = vadd.f32 %v1392, %v1625
        %1627 = vmatprep.mubr.bf16.mxu0 0
        %1628 = vmatmul.mubr.bf16.gmra.mrb[0].mxu0 %v1347
        %v1629 = vpop.f32.mrb[0].mxu0
        %v1630 = vadd.f32 %v1388, %v1629
        %v1631 = vpop.f32.mrb[0].mxu0
        %v1632 = vadd.f32 %v1392, %v1631
        %v1633 = vpop.f32.mrb[0].mxu0
        %v1634 = vadd.f32 %v1388, %v1633
        %v1635 = vpop.f32.mrb[0].mxu0
        %v1636 = vadd.f32 %v1392, %v1635
        %1637 = vmatprep.mubr.bf16.mxu0 0
        %1638 = vmatmul.mubr.bf16.gmra.mrb[0].mxu0 %v1348
        %v1639 = vpop.f32.mrb[0].mxu0
        %v1640 = vadd.f32 %v1388, %v1639
        %v1641 = vpop.f32.mrb[0].mxu0
        %v1642 = vadd.f32 %v1392, %v1641
        %v1643 = vpop.f32.mrb[0].mxu0
        %v1644 = vadd.f32 %v1388, %v1643
        %v1645 = vpop.f32.mrb[0].mxu0
        %v1646 = vadd.f32 %v1392, %v1645
        %1647 = vmatprep.mubr.bf16.mxu0 0
        %1648 = vmatmul.mubr.bf16.gmra.mrb[0].mxu0 %v1349
        %v1649 = vpop.f32.mrb[0].mxu0
        %v1650 = vadd.f32 %v1388, %v1649
        %v1651 = vpop.f32.mrb[0].mxu0
        %v1652 = vadd.f32 %v1392, %v1651
        %v1653 = vpop.f32.mrb[0].mxu0
        %v1654 = vadd.f32 %v1388, %v1653
        %v1655 = vpop.f32.mrb[0].mxu0
        %v1656 = vadd.f32 %v1392, %v1655
        %1657 = vmatprep.mubr.bf16.mxu0 0
        %1658 = vmatmul.mubr.bf16.gmra.mrb[0].mxu0 %v1350
        %v1659 = vpop.f32.mrb[0].mxu0
        %v1660 = vadd.f32 %v1388, %v1659
        %v1661 = vpop.f32.mrb[0].mxu0
        %v1662 = vadd.f32 %v1392, %v1661
        %v1663 = vpop.f32.mrb[0].mxu0
        %v1664 = vadd.f32 %v1388, %v1663
        %v1665 = vpop.f32.mrb[0].mxu0
        %v1666 = vadd.f32 %v1392, %v1665
        %1667 = vmatprep.mubr.bf16.mxu0 0
        %1668 = vmatmul.mubr.bf16.gmra.mrb[0].mxu0 %v1351
        %v1669 = vpop.f32.mrb[0].mxu0
        %v1670 = vadd.f32 %v1388, %v1669
        %v1671 = vpop.f32.mrb[0].mxu0
        %v1672 = vadd.f32 %v1392, %v1671
        %v1673 = vpop.f32.mrb[0].mxu0
        %v1674 = vadd.f32 %v1388, %v1673
        %v1675 = vpop.f32.mrb[0].mxu0
        %v1676 = vadd.f32 %v1392, %v1675
        %1677 = vmatprep.mubr.bf16.mxu0 0
        %1678 = vmatmul.mubr.bf16.gmra.mrb[0].mxu0 %v1352
        %v1679 = vpop.f32.mrb[0].mxu0
        %v1680 = vadd.f32 %v1388, %v1679
        %v1681 = vpop.f32.mrb[0].mxu0
        %v1682 = vadd.f32 %v1392, %v1681
        %v1683 = vpop.f32.mrb[0].mxu0
        %v1684 = vadd.f32 %v1388, %v1683
        %v1685 = vpop.f32.mrb[0].mxu0
        %v1686 = vadd.f32 %v1392, %v1685
        %1687 = vmatprep.mubr.bf16.mxu0 0
        %1688 = vmatmul.mubr.bf16.gmra.mrb[0].mxu0 %v1353
        %v1689 = vpop.f32.mrb[0].mxu0
        %v1690 = vadd.f32 %v1388, %v1689
        %v1691 = vpop.f32.mrb[0].mxu0
        %v1692 = vadd.f32 %v1392, %v1691
        %v1693 = vpop.f32.mrb[0].mxu0
        %v1694 = vadd.f32 %v1388, %v1693
        %v1695 = vpop.f32.mrb[0].mxu0
        %v1696 = vadd.f32 %v1392, %v1695
        %1697 = vmatprep.mubr.bf16.mxu0 0
        %1698 = vmatmul.mubr.bf16.gmra.mrb[0].mxu0 %v1354
        %v1699 = vpop.f32.mrb[0].mxu0
        %v1700 = vadd.f32 %v1388, %v1699
        %v1701 = vpop.f32.mrb[0].mxu0
        %v1702 = vadd.f32 %v1392, %v1701
        %v1703 = vpop.f32.mrb[0].mxu0
        %v1704 = vadd.f32 %v1388, %v1703
        %v1705 = vpop.f32.mrb[0].mxu0
        %v1706 = vadd.f32 %v1392, %v1705
        %1707 = vmatprep.mubr.bf16.mxu0 0
        %1708 = vmatmul.mubr.bf16.gmra.mrb[0].mxu0 %v1355
        %v1709 = vpop.f32.mrb[0].mxu0
        %v1710 = vadd.f32 %v1388, %v1709
        %v1711 = vpop.f32.mrb[0].mxu0
        %v1712 = vadd.f32 %v1392, %v1711
        %v1713 = vpop.f32.mrb[0].mxu0
        %v1714 = vadd.f32 %v1388, %v1713
        %v1715 = vpop.f32.mrb[0].mxu0
        %v1716 = vadd.f32 %v1392, %v1715
        %1717 = vmatprep.mubr.bf16.mxu0 0
        %1718 = vmatmul.mubr.bf16.gmra.mrb[0].mxu0 %v1356
        %v1719 = vpop.f32.mrb[0].mxu0
        %v1720 = vadd.f32 %v1388, %v1719
        %v1721 = vpop.f32.mrb[0].mxu0
        %v1722 = vadd.f32 %v1392, %v1721
        %v1723 = vpop.f32.mrb[0].mxu0
        %v1724 = vadd.f32 %v1388, %v1723
        %v1725 = vpop.f32.mrb[0].mxu0
        %v1726 = vadd.f32 %v1392, %v1725
        %1727 = vmatprep.mubr.bf16.mxu0 0
        %1728 = vmatmul.mubr.bf16.gmra.mrb[0].mxu0 %v1357
        %v1729 = vpop.f32.mrb[0].mxu0
        %v1730 = vadd.f32 %v1388, %v1729
        %v1731 = vpop.f32.mrb[0].mxu0
        %v1732 = vadd.f32 %v1392, %v1731
        %v1733 = vpop.f32.mrb[0].mxu0
        %v1734 = vadd.f32 %v1388, %v1733
        %v1735 = vpop.f32.mrb[0].mxu0
        %v1736 = vadd.f32 %v1392, %v1735
        %1737 = vmatprep.mubr.bf16.mxu0 0
        %1738 = vmatmul.mubr.bf16.gmra.mrb[0].mxu0 %v1358
        %v1739 = vpop.f32.mrb[0].mxu0
        %v1740 = vadd.f32 %v1388, %v1739
        %v1741 = vpop.f32.mrb[0].mxu0
        %v1742 = vadd.f32 %v1392, %v1741
        %v1743 = vpop.f32.mrb[0].mxu0
        %v1744 = vadd.f32 %v1388, %v1743
        %v1745 = vpop.f32.mrb[0].mxu0
        %v1746 = vadd.f32 %v1392, %v1745
        %1747 = vmatprep.mubr.bf16.mxu0 0
        %1748 = vmatmul.mubr.bf16.gmra.mrb[0].mxu0 %v1359
        %v1749 = vpop.f32.mrb[0].mxu0
        %v1750 = vadd.f32 %v1388, %v1749
        %v1751 = vpop.f32.mrb[0].mxu0
        %v1752 = vadd.f32 %v1392, %v1751
        %v1753 = vpop.f32.mrb[0].mxu0
        %v1754 = vadd.f32 %v1388, %v1753
        %v1755 = vpop.f32.mrb[0].mxu0
        %v1756 = vadd.f32 %v1392, %v1755
        %1757 = vmatprep.mubr.bf16.mxu0 0
        %1758 = vmatmul.mubr.bf16.gmra.mrb[0].mxu0 %v1360
        %v1759 = vpop.f32.mrb[0].mxu0
        %v1760 = vadd.f32 %v1388, %v1759
        %v1761 = vpop.f32.mrb[0].mxu0
        %v1762 = vadd.f32 %v1392, %v1761
        %v1763 = vpop.f32.mrb[0].mxu0
        %v1764 = vadd.f32 %v1388, %v1763
        %v1765 = vpop.f32.mrb[0].mxu0
        %v1766 = vadd.f32 %v1392, %v1765
        %1767 = vmatprep.mubr.bf16.mxu0 0
        %1768 = vmatmul.mubr.bf16.gmra.mrb[0].mxu0 %v1361
        %v1769 = vpop.f32.mrb[0].mxu0
        %v1770 = vadd.f32 %v1388, %v1769
        %v1771 = vpop.f32.mrb[0].mxu0
        %v1772 = vadd.f32 %v1392, %v1771
        %v1773 = vpop.f32.mrb[0].mxu0
        %v1774 = vadd.f32 %v1388, %v1773
        %v1775 = vpop.f32.mrb[0].mxu0
        %v1776 = vadd.f32 %v1392, %v1775
        %1777 = vmatprep.mubr.bf16.mxu0 0
        %1778 = vmatmul.mubr.bf16.gmra.mrb[0].mxu0 %v1362
        %v1779 = vpop.f32.mrb[0].mxu0
        %v1780 = vadd.f32 %v1388, %v1779
        %v1781 = vpop.f32.mrb[0].mxu0
        %v1782 = vadd.f32 %v1392, %v1781
        %v1783 = vpop.f32.mrb[0].mxu0
        %v1784 = vadd.f32 %v1388, %v1783
        %v1785 = vpop.f32.mrb[0].mxu0
        %v1786 = vadd.f32 %v1392, %v1785
        %1787 = vmatprep.mubr.bf16.mxu0 0
        %1788 = vmatmul.mubr.bf16.gmra.mrb[0].mxu0 %v1363
        %v1789 = vpop.f32.mrb[0].mxu0
        %v1790 = vadd.f32 %v1388, %v1789
        %v1791 = vpop.f32.mrb[0].mxu0
        %v1792 = vadd.f32 %v1392, %v1791
        %v1793 = vpop.f32.mrb[0].mxu0
        %v1794 = vadd.f32 %v1388, %v1793
        %v1795 = vpop.f32.mrb[0].mxu0
        %v1796 = vadd.f32 %v1392, %v1795
        %1797 = vmatprep.mubr.bf16.mxu0 0
        %1798 = vmatmul.mubr.bf16.gmra.mrb[0].mxu0 %v1364
        %v1799 = vpop.f32.mrb[0].mxu0
        %v1800 = vadd.f32 %v1388, %v1799
        %v1801 = vpop.f32.mrb[0].mxu0
        %v1802 = vadd.f32 %v1392, %v1801
        %v1803 = vpop.f32.mrb[0].mxu0
        %v1804 = vadd.f32 %v1388, %v1803
        %v1805 = vpop.f32.mrb[0].mxu0
        %v1806 = vadd.f32 %v1392, %v1805
        %1807 = vmatprep.mubr.bf16.mxu0 0
        %1808 = vmatmul.mubr.bf16.gmra.mrb[0].mxu0 %v1365
        %v1809 = vpop.f32.mrb[0].mxu0
        %v1810 = vadd.f32 %v1388, %v1809
        %v1811 = vpop.f32.mrb[0].mxu0
        %v1812 = vadd.f32 %v1392, %v1811
        %v1813 = vpop.f32.mrb[0].mxu0
        %v1814 = vadd.f32 %v1388, %v1813
        %v1815 = vpop.f32.mrb[0].mxu0
        %v1816 = vadd.f32 %v1392, %v1815
        %1817 = vmatprep.mubr.bf16.mxu0 0
        %1818 = vmatmul.mubr.bf16.gmra.mrb[0].mxu0 %v1366
        %v1819 = vpop.f32.mrb[0].mxu0
        %v1820 = vadd.f32 %v1388, %v1819
        %v1821 = vpop.f32.mrb[0].mxu0
        %v1822 = vadd.f32 %v1392, %v1821
        %v1823 = vpop.f32.mrb[0].mxu0
        %v1824 = vadd.f32 %v1388, %v1823
        %v1825 = vpop.f32.mrb[0].mxu0
        %v1826 = vadd.f32 %v1392, %v1825
        %1827 = vdwg.mxu0
        %v1828 = vxor.u32 %v1510, 2147483648
        %v1829 = vxor.u32 %v1512, 2147483648
        %v1830 = vxor.u32 %v1514, 2147483648
        %v1831 = vxor.u32 %v1516, 2147483648
        %v1832 = vxor.u32 %v1520, 2147483648
        %v1833 = vxor.u32 %v1522, 2147483648
        %v1834 = vxor.u32 %v1524, 2147483648
        %v1835 = vxor.u32 %v1526, 2147483648
        %v1836 = vxor.u32 %v1530, 2147483648
        %v1837 = vxor.u32 %v1532, 2147483648
        %v1838 = vxor.u32 %v1534, 2147483648
        %v1839 = vxor.u32 %v1536, 2147483648
        %v1840 = vxor.u32 %v1540, 2147483648
        %v1841 = vxor.u32 %v1542, 2147483648
        %v1842 = vxor.u32 %v1544, 2147483648
        %v1843 = vxor.u32 %v1546, 2147483648
        %v1844 = vxor.u32 %v1550, 2147483648
        %v1845 = vxor.u32 %v1552, 2147483648
        %v1846 = vxor.u32 %v1554, 2147483648
        %v1847 = vxor.u32 %v1556, 2147483648
        %v1848 = vxor.u32 %v1560, 2147483648
        %v1849 = vxor.u32 %v1562, 2147483648
        %v1850 = vxor.u32 %v1564, 2147483648
        %v1851 = vxor.u32 %v1566, 2147483648
        %v1852 = vxor.u32 %v1570, 2147483648
        %v1853 = vxor.u32 %v1572, 2147483648
        %v1854 = vxor.u32 %v1574, 2147483648
        %v1855 = vxor.u32 %v1576, 2147483648
        %v1856 = vxor.u32 %v1580, 2147483648
        %v1857 = vxor.u32 %v1582, 2147483648
        %v1858 = vxor.u32 %v1584, 2147483648
        %v1859 = vxor.u32 %v1586, 2147483648
        %v1860 = vxor.u32 %v1590, 2147483648
        %v1861 = vxor.u32 %v1592, 2147483648
        %v1862 = vxor.u32 %v1594, 2147483648
        %v1863 = vxor.u32 %v1596, 2147483648
        %v1864 = vxor.u32 %v1600, 2147483648
        %v1865 = vxor.u32 %v1602, 2147483648
        %v1866 = vxor.u32 %v1604, 2147483648
        %v1867 = vxor.u32 %v1606, 2147483648
        %v1868 = vxor.u32 %v1610, 2147483648
        %v1869 = vxor.u32 %v1612, 2147483648
        %v1870 = vxor.u32 %v1614, 2147483648
        %v1871 = vxor.u32 %v1616, 2147483648
        %v1872 = vxor.u32 %v1620, 2147483648
        %v1873 = vxor.u32 %v1622, 2147483648
        %v1874 = vxor.u32 %v1624, 2147483648
        %v1875 = vxor.u32 %v1626, 2147483648
        %v1876 = vxor.u32 %v1630, 2147483648
        %v1877 = vxor.u32 %v1632, 2147483648
        %v1878 = vxor.u32 %v1634, 2147483648
        %v1879 = vxor.u32 %v1636, 2147483648
        %v1880 = vxor.u32 %v1640, 2147483648
        %v1881 = vxor.u32 %v1642, 2147483648
        %v1882 = vxor.u32 %v1644, 2147483648
        %v1883 = vxor.u32 %v1646, 2147483648
        %v1884 = vxor.u32 %v1650, 2147483648
        %v1885 = vxor.u32 %v1652, 2147483648
        %v1886 = vxor.u32 %v1654, 2147483648
        %v1887 = vxor.u32 %v1656, 2147483648
        %v1888 = vxor.u32 %v1660, 2147483648
        %v1889 = vxor.u32 %v1662, 2147483648
        %v1890 = vxor.u32 %v1664, 2147483648
        %v1891 = vxor.u32 %v1666, 2147483648
        %v1892 = vxor.u32 %v1670, 2147483648
        %v1893 = vxor.u32 %v1672, 2147483648
        %v1894 = vxor.u32 %v1674, 2147483648
        %v1895 = vxor.u32 %v1676, 2147483648
        %v1896 = vxor.u32 %v1680, 2147483648
        %v1897 = vxor.u32 %v1682, 2147483648
        %v1898 = vxor.u32 %v1684, 2147483648
        %v1899 = vxor.u32 %v1686, 2147483648
        %v1900 = vxor.u32 %v1690, 2147483648
        %v1901 = vxor.u32 %v1692, 2147483648
        %v1902 = vxor.u32 %v1694, 2147483648
        %v1903 = vxor.u32 %v1696, 2147483648
        %v1904 = vxor.u32 %v1700, 2147483648
        %v1905 = vxor.u32 %v1702, 2147483648
        %v1906 = vxor.u32 %v1704, 2147483648
        %v1907 = vxor.u32 %v1706, 2147483648
        %v1908 = vxor.u32 %v1710, 2147483648
        %v1909 = vxor.u32 %v1712, 2147483648
        %v1910 = vxor.u32 %v1714, 2147483648
        %v1911 = vxor.u32 %v1716, 2147483648
        %v1912 = vxor.u32 %v1720, 2147483648
        %v1913 = vxor.u32 %v1722, 2147483648
        %v1914 = vxor.u32 %v1724, 2147483648
        %v1915 = vxor.u32 %v1726, 2147483648
        %v1916 = vxor.u32 %v1730, 2147483648
        %v1917 = vxor.u32 %v1732, 2147483648
        %v1918 = vxor.u32 %v1734, 2147483648
        %v1919 = vxor.u32 %v1736, 2147483648
        %v1920 = vxor.u32 %v1740, 2147483648
        %v1921 = vxor.u32 %v1742, 2147483648
        %v1922 = vxor.u32 %v1744, 2147483648
        %v1923 = vxor.u32 %v1746, 2147483648
        %v1924 = vxor.u32 %v1750, 2147483648
        %v1925 = vxor.u32 %v1752, 2147483648
        %v1926 = vxor.u32 %v1754, 2147483648
        %v1927 = vxor.u32 %v1756, 2147483648
        %v1928 = vxor.u32 %v1760, 2147483648
        %v1929 = vxor.u32 %v1762, 2147483648
        %v1930 = vxor.u32 %v1764, 2147483648
        %v1931 = vxor.u32 %v1766, 2147483648
        %v1932 = vxor.u32 %v1770, 2147483648
        %v1933 = vxor.u32 %v1772, 2147483648
        %v1934 = vxor.u32 %v1774, 2147483648
        %v1935 = vxor.u32 %v1776, 2147483648
        %v1936 = vxor.u32 %v1780, 2147483648
        %v1937 = vxor.u32 %v1782, 2147483648
        %v1938 = vxor.u32 %v1784, 2147483648
        %v1939 = vxor.u32 %v1786, 2147483648
        %v1940 = vxor.u32 %v1790, 2147483648
        %v1941 = vxor.u32 %v1792, 2147483648
        %v1942 = vxor.u32 %v1794, 2147483648
        %v1943 = vxor.u32 %v1796, 2147483648
        %v1944 = vxor.u32 %v1800, 2147483648
        %v1945 = vxor.u32 %v1802, 2147483648
        %v1946 = vxor.u32 %v1804, 2147483648
        %v1947 = vxor.u32 %v1806, 2147483648
        %v1948 = vxor.u32 %v1810, 2147483648
        %v1949 = vxor.u32 %v1812, 2147483648
        %v1950 = vxor.u32 %v1814, 2147483648
        %v1951 = vxor.u32 %v1816, 2147483648
        %v1952 = vxor.u32 %v1820, 2147483648
        %v1953 = vxor.u32 %v1822, 2147483648
        %v1954 = vxor.u32 %v1824, 2147483648
        %v1955 = vxor.u32 %v1826, 2147483648
        %v1956 = vmul.f32 %v1828, 1.442695
        %v1957 = vpow.pop %v1956
        %v1958 = vmul.f32 %v1829, 1.442695
        %v1959 = vpow.pop %v1958
        %v1960 = vmul.f32 %v1830, 1.442695
        %v1961 = vpow.pop %v1960
        %v1962 = vmul.f32 %v1831, 1.442695
        %v1963 = vpow.pop %v1962
        %v1964 = vmul.f32 %v1832, 1.442695
        %v1965 = vpow.pop %v1964
        %v1966 = vmul.f32 %v1833, 1.442695
        %v1967 = vpow.pop %v1966
        %v1968 = vmul.f32 %v1834, 1.442695
        %v1969 = vpow.pop %v1968
        %v1970 = vmul.f32 %v1835, 1.442695
        %v1971 = vpow.pop %v1970
        %v1972 = vmul.f32 %v1836, 1.442695
        %v1973 = vpow.pop %v1972
        %v1974 = vmul.f32 %v1837, 1.442695
        %v1975 = vpow.pop %v1974
        %v1976 = vmul.f32 %v1838, 1.442695
        %v1977 = vpow.pop %v1976
        %v1978 = vmul.f32 %v1839, 1.442695
        %v1979 = vpow.pop %v1978
        %v1980 = vmul.f32 %v1840, 1.442695
        %v1981 = vpow.pop %v1980
        %v1982 = vmul.f32 %v1841, 1.442695
        %v1983 = vpow.pop %v1982
        %v1984 = vmul.f32 %v1842, 1.442695
        %v1985 = vpow.pop %v1984
        %v1986 = vmul.f32 %v1843, 1.442695
        %v1987 = vpow.pop %v1986
        %v1988 = vmul.f32 %v1844, 1.442695
        %v1989 = vpow.pop %v1988
        %v1990 = vmul.f32 %v1845, 1.442695
        %v1991 = vpow.pop %v1990
        %v1992 = vmul.f32 %v1846, 1.442695
        %v1993 = vpow.pop %v1992
        %v1994 = vmul.f32 %v1847, 1.442695
        %v1995 = vpow.pop %v1994
        %v1996 = vmul.f32 %v1848, 1.442695
        %v1997 = vpow.pop %v1996
        %v1998 = vmul.f32 %v1849, 1.442695
        %v1999 = vpow.pop %v1998
        %v2000 = vmul.f32 %v1850, 1.442695
        %v2001 = vpow.pop %v2000
        %v2002 = vmul.f32 %v1851, 1.442695
        %v2003 = vpow.pop %v2002
        %v2004 = vmul.f32 %v1852, 1.442695
        %v2005 = vpow.pop %v2004
        %v2006 = vmul.f32 %v1853, 1.442695
        %v2007 = vpow.pop %v2006
        %v2008 = vmul.f32 %v1854, 1.442695
        %v2009 = vpow.pop %v2008
        %v2010 = vmul.f32 %v1855, 1.442695
        %v2011 = vpow.pop %v2010
        %v2012 = vmul.f32 %v1856, 1.442695
        %v2013 = vpow.pop %v2012
        %v2014 = vmul.f32 %v1857, 1.442695
        %v2015 = vpow.pop %v2014
        %v2016 = vmul.f32 %v1858, 1.442695
        %v2017 = vpow.pop %v2016
        %v2018 = vmul.f32 %v1859, 1.442695
        %v2019 = vpow.pop %v2018
        %v2020 = vmul.f32 %v1860, 1.442695
        %v2021 = vpow.pop %v2020
        %v2022 = vmul.f32 %v1861, 1.442695
        %v2023 = vpow.pop %v2022
        %v2024 = vmul.f32 %v1862, 1.442695
        %v2025 = vpow.pop %v2024
        %v2026 = vmul.f32 %v1863, 1.442695
        %v2027 = vpow.pop %v2026
        %v2028 = vmul.f32 %v1864, 1.442695
        %v2029 = vpow.pop %v2028
        %v2030 = vmul.f32 %v1865, 1.442695
        %v2031 = vpow.pop %v2030
        %v2032 = vmul.f32 %v1866, 1.442695
        %v2033 = vpow.pop %v2032
        %v2034 = vmul.f32 %v1867, 1.442695
        %v2035 = vpow.pop %v2034
        %v2036 = vmul.f32 %v1868, 1.442695
        %v2037 = vpow.pop %v2036
        %v2038 = vmul.f32 %v1869, 1.442695
        %v2039 = vpow.pop %v2038
        %v2040 = vmul.f32 %v1870, 1.442695
        %v2041 = vpow.pop %v2040
        %v2042 = vmul.f32 %v1871, 1.442695
        %v2043 = vpow.pop %v2042
        %v2044 = vmul.f32 %v1872, 1.442695
        %v2045 = vpow.pop %v2044
        %v2046 = vmul.f32 %v1873, 1.442695
        %v2047 = vpow.pop %v2046
        %v2048 = vmul.f32 %v1874, 1.442695
        %v2049 = vpow.pop %v2048
        %v2050 = vmul.f32 %v1875, 1.442695
        %v2051 = vpow.pop %v2050
        %v2052 = vmul.f32 %v1876, 1.442695
        %v2053 = vpow.pop %v2052
        %v2054 = vmul.f32 %v1877, 1.442695
        %v2055 = vpow.pop %v2054
        %v2056 = vmul.f32 %v1878, 1.442695
        %v2057 = vpow.pop %v2056
        %v2058 = vmul.f32 %v1879, 1.442695
        %v2059 = vpow.pop %v2058
        %v2060 = vmul.f32 %v1880, 1.442695
        %v2061 = vpow.pop %v2060
        %v2062 = vmul.f32 %v1881, 1.442695
        %v2063 = vpow.pop %v2062
        %v2064 = vmul.f32 %v1882, 1.442695
        %v2065 = vpow.pop %v2064
        %v2066 = vmul.f32 %v1883, 1.442695
        %v2067 = vpow.pop %v2066
        %v2068 = vmul.f32 %v1884, 1.442695
        %v2069 = vpow.pop %v2068
        %v2070 = vmul.f32 %v1885, 1.442695
        %v2071 = vpow.pop %v2070
        %v2072 = vmul.f32 %v1886, 1.442695
        %v2073 = vpow.pop %v2072
        %v2074 = vmul.f32 %v1887, 1.442695
        %v2075 = vpow.pop %v2074
        %v2076 = vmul.f32 %v1888, 1.442695
        %v2077 = vpow.pop %v2076
        %v2078 = vmul.f32 %v1889, 1.442695
        %v2079 = vpow.pop %v2078
        %v2080 = vmul.f32 %v1890, 1.442695
        %v2081 = vpow.pop %v2080
        %v2082 = vmul.f32 %v1891, 1.442695
        %v2083 = vpow.pop %v2082
        %v2084 = vmul.f32 %v1892, 1.442695
        %v2085 = vpow.pop %v2084
        %v2086 = vmul.f32 %v1893, 1.442695
        %v2087 = vpow.pop %v2086
        %v2088 = vmul.f32 %v1894, 1.442695
        %v2089 = vpow.pop %v2088
        %v2090 = vmul.f32 %v1895, 1.442695
        %v2091 = vpow.pop %v2090
        %v2092 = vmul.f32 %v1896, 1.442695
        %v2093 = vpow.pop %v2092
        %v2094 = vmul.f32 %v1897, 1.442695
        %v2095 = vpow.pop %v2094
        %v2096 = vmul.f32 %v1898, 1.442695
        %v2097 = vpow.pop %v2096
        %v2098 = vmul.f32 %v1899, 1.442695
        %v2099 = vpow.pop %v2098
        %v2100 = vmul.f32 %v1900, 1.442695
        %v2101 = vpow.pop %v2100
        %v2102 = vmul.f32 %v1901, 1.442695
        %v2103 = vpow.pop %v2102
        %v2104 = vmul.f32 %v1902, 1.442695
        %v2105 = vpow.pop %v2104
        %v2106 = vmul.f32 %v1903, 1.442695
        %v2107 = vpow.pop %v2106
        %v2108 = vmul.f32 %v1904, 1.442695
        %v2109 = vpow.pop %v2108
        %v2110 = vmul.f32 %v1905, 1.442695
        %v2111 = vpow.pop %v2110
        %v2112 = vmul.f32 %v1906, 1.442695
        %v2113 = vpow.pop %v2112
        %v2114 = vmul.f32 %v1907, 1.442695
        %v2115 = vpow.pop %v2114
        %v2116 = vmul.f32 %v1908, 1.442695
        %v2117 = vpow.pop %v2116
        %v2118 = vmul.f32 %v1909, 1.442695
        %v2119 = vpow.pop %v2118
        %v2120 = vmul.f32 %v1910, 1.442695
        %v2121 = vpow.pop %v2120
        %v2122 = vmul.f32 %v1911, 1.442695
        %v2123 = vpow.pop %v2122
        %v2124 = vmul.f32 %v1912, 1.442695
        %v2125 = vpow.pop %v2124
        %v2126 = vmul.f32 %v1913, 1.442695
        %v2127 = vpow.pop %v2126
        %v2128 = vmul.f32 %v1914, 1.442695
        %v2129 = vpow.pop %v2128
        %v2130 = vmul.f32 %v1915, 1.442695
        %v2131 = vpow.pop %v2130
        %v2132 = vmul.f32 %v1916, 1.442695
        %v2133 = vpow.pop %v2132
        %v2134 = vmul.f32 %v1917, 1.442695
        %v2135 = vpow.pop %v2134
        %v2136 = vmul.f32 %v1918, 1.442695
        %v2137 = vpow.pop %v2136
        %v2138 = vmul.f32 %v1919, 1.442695
        %v2139 = vpow.pop %v2138
        %v2140 = vmul.f32 %v1920, 1.442695
        %v2141 = vpow.pop %v2140
        %v2142 = vmul.f32 %v1921, 1.442695
        %v2143 = vpow.pop %v2142
        %v2144 = vmul.f32 %v1922, 1.442695
        %v2145 = vpow.pop %v2144
        %v2146 = vmul.f32 %v1923, 1.442695
        %v2147 = vpow.pop %v2146
        %v2148 = vmul.f32 %v1924, 1.442695
        %v2149 = vpow.pop %v2148
        %v2150 = vmul.f32 %v1925, 1.442695
        %v2151 = vpow.pop %v2150
        %v2152 = vmul.f32 %v1926, 1.442695
        %v2153 = vpow.pop %v2152
        %v2154 = vmul.f32 %v1927, 1.442695
        %v2155 = vpow.pop %v2154
        %v2156 = vmul.f32 %v1928, 1.442695
        %v2157 = vpow.pop %v2156
        %v2158 = vmul.f32 %v1929, 1.442695
        %v2159 = vpow.pop %v2158
        %v2160 = vmul.f32 %v1930, 1.442695
        %v2161 = vpow.pop %v2160
        %v2162 = vmul.f32 %v1931, 1.442695
        %v2163 = vpow.pop %v2162
        %v2164 = vmul.f32 %v1932, 1.442695
        %v2165 = vpow.pop %v2164
        %v2166 = vmul.f32 %v1933, 1.442695
        %v2167 = vpow.pop %v2166
        %v2168 = vmul.f32 %v1934, 1.442695
        %v2169 = vpow.pop %v2168
        %v2170 = vmul.f32 %v1935, 1.442695
        %v2171 = vpow.pop %v2170
        %v2172 = vmul.f32 %v1936, 1.442695
        %v2173 = vpow.pop %v2172
        %v2174 = vmul.f32 %v1937, 1.442695
        %v2175 = vpow.pop %v2174
        %v2176 = vmul.f32 %v1938, 1.442695
        %v2177 = vpow.pop %v2176
        %v2178 = vmul.f32 %v1939, 1.442695
        %v2179 = vpow.pop %v2178
        %v2180 = vmul.f32 %v1940, 1.442695
        %v2181 = vpow.pop %v2180
        %v2182 = vmul.f32 %v1941, 1.442695
        %v2183 = vpow.pop %v2182
        %v2184 = vmul.f32 %v1942, 1.442695
        %v2185 = vpow.pop %v2184
        %v2186 = vmul.f32 %v1943, 1.442695
        %v2187 = vpow.pop %v2186
        %v2188 = vmul.f32 %v1944, 1.442695
        %v2189 = vpow.pop %v2188
        %v2190 = vmul.f32 %v1945, 1.442695
        %v2191 = vpow.pop %v2190
        %v2192 = vmul.f32 %v1946, 1.442695
        %v2193 = vpow.pop %v2192
        %v2194 = vmul.f32 %v1947, 1.442695
        %v2195 = vpow.pop %v2194
        %v2196 = vmul.f32 %v1948, 1.442695
        %v2197 = vpow.pop %v2196
        %v2198 = vmul.f32 %v1949, 1.442695
        %v2199 = vpow.pop %v2198
        %v2200 = vmul.f32 %v1950, 1.442695
        %v2201 = vpow.pop %v2200
        %v2202 = vmul.f32 %v1951, 1.442695
        %v2203 = vpow.pop %v2202
        %v2204 = vmul.f32 %v1952, 1.442695
        %v2205 = vpow.pop %v2204
        %v2206 = vmul.f32 %v1953, 1.442695
        %v2207 = vpow.pop %v2206
        %v2208 = vmul.f32 %v1954, 1.442695
        %v2209 = vpow.pop %v2208
        %v2210 = vmul.f32 %v1955, 1.442695
        %v2211 = vpow.pop %v2210
        %v2212 = vadd.f32 %v1957, 1.0
        %v2213 = vadd.f32 %v1959, 1.0
        %v2214 = vadd.f32 %v1961, 1.0
        %v2215 = vadd.f32 %v1963, 1.0
        %v2216 = vadd.f32 %v1965, 1.0
        %v2217 = vadd.f32 %v1967, 1.0
        %v2218 = vadd.f32 %v1969, 1.0
        %v2219 = vadd.f32 %v1971, 1.0
        %v2220 = vadd.f32 %v1973, 1.0
        %v2221 = vadd.f32 %v1975, 1.0
        %v2222 = vadd.f32 %v1977, 1.0
        %v2223 = vadd.f32 %v1979, 1.0
        %v2224 = vadd.f32 %v1981, 1.0
        %v2225 = vadd.f32 %v1983, 1.0
        %v2226 = vadd.f32 %v1985, 1.0
        %v2227 = vadd.f32 %v1987, 1.0
        %v2228 = vadd.f32 %v1989, 1.0
        %v2229 = vadd.f32 %v1991, 1.0
        %v2230 = vadd.f32 %v1993, 1.0
        %v2231 = vadd.f32 %v1995, 1.0
        %v2232 = vadd.f32 %v1997, 1.0
        %v2233 = vadd.f32 %v1999, 1.0
        %v2234 = vadd.f32 %v2001, 1.0
        %v2235 = vadd.f32 %v2003, 1.0
        %v2236 = vadd.f32 %v2005, 1.0
        %v2237 = vadd.f32 %v2007, 1.0
        %v2238 = vadd.f32 %v2009, 1.0
        %v2239 = vadd.f32 %v2011, 1.0
        %v2240 = vadd.f32 %v2013, 1.0
        %v2241 = vadd.f32 %v2015, 1.0
        %v2242 = vadd.f32 %v2017, 1.0
        %v2243 = vadd.f32 %v2019, 1.0
        %v2244 = vadd.f32 %v2021, 1.0
        %v2245 = vadd.f32 %v2023, 1.0
        %v2246 = vadd.f32 %v2025, 1.0
        %v2247 = vadd.f32 %v2027, 1.0
        %v2248 = vadd.f32 %v2029, 1.0
        %v2249 = vadd.f32 %v2031, 1.0
        %v2250 = vadd.f32 %v2033, 1.0
        %v2251 = vadd.f32 %v2035, 1.0
        %v2252 = vadd.f32 %v2037, 1.0
        %v2253 = vadd.f32 %v2039, 1.0
        %v2254 = vadd.f32 %v2041, 1.0
        %v2255 = vadd.f32 %v2043, 1.0
        %v2256 = vadd.f32 %v2045, 1.0
        %v2257 = vadd.f32 %v2047, 1.0
        %v2258 = vadd.f32 %v2049, 1.0
        %v2259 = vadd.f32 %v2051, 1.0
        %v2260 = vadd.f32 %v2053, 1.0
        %v2261 = vadd.f32 %v2055, 1.0
        %v2262 = vadd.f32 %v2057, 1.0
        %v2263 = vadd.f32 %v2059, 1.0
        %v2264 = vadd.f32 %v2061, 1.0
        %v2265 = vadd.f32 %v2063, 1.0
        %v2266 = vadd.f32 %v2065, 1.0
        %v2267 = vadd.f32 %v2067, 1.0
        %v2268 = vadd.f32 %v2069, 1.0
        %v2269 = vadd.f32 %v2071, 1.0
        %v2270 = vadd.f32 %v2073, 1.0
        %v2271 = vadd.f32 %v2075, 1.0
        %v2272 = vadd.f32 %v2077, 1.0
        %v2273 = vadd.f32 %v2079, 1.0
        %v2274 = vadd.f32 %v2081, 1.0
        %v2275 = vadd.f32 %v2083, 1.0
        %v2276 = vadd.f32 %v2085, 1.0
        %v2277 = vadd.f32 %v2087, 1.0
        %v2278 = vadd.f32 %v2089, 1.0
        %v2279 = vadd.f32 %v2091, 1.0
        %v2280 = vadd.f32 %v2093, 1.0
        %v2281 = vadd.f32 %v2095, 1.0
        %v2282 = vadd.f32 %v2097, 1.0
        %v2283 = vadd.f32 %v2099, 1.0
        %v2284 = vadd.f32 %v2101, 1.0
        %v2285 = vadd.f32 %v2103, 1.0
        %v2286 = vadd.f32 %v2105, 1.0
        %v2287 = vadd.f32 %v2107, 1.0
        %v2288 = vadd.f32 %v2109, 1.0
        %v2289 = vadd.f32 %v2111, 1.0
        %v2290 = vadd.f32 %v2113, 1.0
        %v2291 = vadd.f32 %v2115, 1.0
        %v2292 = vadd.f32 %v2117, 1.0
        %v2293 = vadd.f32 %v2119, 1.0
        %v2294 = vadd.f32 %v2121, 1.0
        %v2295 = vadd.f32 %v2123, 1.0
        %v2296 = vadd.f32 %v2125, 1.0
        %v2297 = vadd.f32 %v2127, 1.0
        %v2298 = vadd.f32 %v2129, 1.0
        %v2299 = vadd.f32 %v2131, 1.0
        %v2300 = vadd.f32 %v2133, 1.0
        %v2301 = vadd.f32 %v2135, 1.0
        %v2302 = vadd.f32 %v2137, 1.0
        %v2303 = vadd.f32 %v2139, 1.0
        %v2304 = vadd.f32 %v2141, 1.0
        %v2305 = vadd.f32 %v2143, 1.0
        %v2306 = vadd.f32 %v2145, 1.0
        %v2307 = vadd.f32 %v2147, 1.0
        %v2308 = vadd.f32 %v2149, 1.0
        %v2309 = vadd.f32 %v2151, 1.0
        %v2310 = vadd.f32 %v2153, 1.0
        %v2311 = vadd.f32 %v2155, 1.0
        %v2312 = vadd.f32 %v2157, 1.0
        %v2313 = vadd.f32 %v2159, 1.0
        %v2314 = vadd.f32 %v2161, 1.0
        %v2315 = vadd.f32 %v2163, 1.0
        %v2316 = vadd.f32 %v2165, 1.0
        %v2317 = vadd.f32 %v2167, 1.0
        %v2318 = vadd.f32 %v2169, 1.0
        %v2319 = vadd.f32 %v2171, 1.0
        %v2320 = vadd.f32 %v2173, 1.0
        %v2321 = vadd.f32 %v2175, 1.0
        %v2322 = vadd.f32 %v2177, 1.0
        %v2323 = vadd.f32 %v2179, 1.0
        %v2324 = vadd.f32 %v2181, 1.0
        %v2325 = vadd.f32 %v2183, 1.0
        %v2326 = vadd.f32 %v2185, 1.0
        %v2327 = vadd.f32 %v2187, 1.0
        %v2328 = vadd.f32 %v2189, 1.0
        %v2329 = vadd.f32 %v2191, 1.0
        %v2330 = vadd.f32 %v2193, 1.0
        %v2331 = vadd.f32 %v2195, 1.0
        %v2332 = vadd.f32 %v2197, 1.0
        %v2333 = vadd.f32 %v2199, 1.0
        %v2334 = vadd.f32 %v2201, 1.0
        %v2335 = vadd.f32 %v2203, 1.0
        %v2336 = vadd.f32 %v2205, 1.0
        %v2337 = vadd.f32 %v2207, 1.0
        %v2338 = vadd.f32 %v2209, 1.0
        %v2339 = vadd.f32 %v2211, 1.0
        %v2340 = vrcp.pop %v2212
        %v2341 = vmul.f32 1.0, %v2340
        %v2342 = vrcp.pop %v2213
        %v2343 = vmul.f32 1.0, %v2342
        %v2344 = vrcp.pop %v2214
        %v2345 = vmul.f32 1.0, %v2344
        %v2346 = vrcp.pop %v2215
        %v2347 = vmul.f32 1.0, %v2346
        %v2348 = vrcp.pop %v2216
        %v2349 = vmul.f32 1.0, %v2348
        %v2350 = vrcp.pop %v2217
        %v2351 = vmul.f32 1.0, %v2350
        %v2352 = vrcp.pop %v2218
        %v2353 = vmul.f32 1.0, %v2352
        %v2354 = vrcp.pop %v2219
        %v2355 = vmul.f32 1.0, %v2354
        %v2356 = vrcp.pop %v2220
        %v2357 = vmul.f32 1.0, %v2356
        %v2358 = vrcp.pop %v2221
        %v2359 = vmul.f32 1.0, %v2358
        %v2360 = vrcp.pop %v2222
        %v2361 = vmul.f32 1.0, %v2360
        %v2362 = vrcp.pop %v2223
        %v2363 = vmul.f32 1.0, %v2362
        %v2364 = vrcp.pop %v2224
        %v2365 = vmul.f32 1.0, %v2364
        %v2366 = vrcp.pop %v2225
        %v2367 = vmul.f32 1.0, %v2366
        %v2368 = vrcp.pop %v2226
        %v2369 = vmul.f32 1.0, %v2368
        %v2370 = vrcp.pop %v2227
        %v2371 = vmul.f32 1.0, %v2370
        %v2372 = vrcp.pop %v2228
        %v2373 = vmul.f32 1.0, %v2372
        %v2374 = vrcp.pop %v2229
        %v2375 = vmul.f32 1.0, %v2374
        %v2376 = vrcp.pop %v2230
        %v2377 = vmul.f32 1.0, %v2376
        %v2378 = vrcp.pop %v2231
        %v2379 = vmul.f32 1.0, %v2378
        %v2380 = vrcp.pop %v2232
        %v2381 = vmul.f32 1.0, %v2380
        %v2382 = vrcp.pop %v2233
        %v2383 = vmul.f32 1.0, %v2382
        %v2384 = vrcp.pop %v2234
        %v2385 = vmul.f32 1.0, %v2384
        %v2386 = vrcp.pop %v2235
        %v2387 = vmul.f32 1.0, %v2386
        %v2388 = vrcp.pop %v2236
        %v2389 = vmul.f32 1.0, %v2388
        %v2390 = vrcp.pop %v2237
        %v2391 = vmul.f32 1.0, %v2390
        %v2392 = vrcp.pop %v2238
        %v2393 = vmul.f32 1.0, %v2392
        %v2394 = vrcp.pop %v2239
        %v2395 = vmul.f32 1.0, %v2394
        %v2396 = vrcp.pop %v2240
        %v2397 = vmul.f32 1.0, %v2396
        %v2398 = vrcp.pop %v2241
        %v2399 = vmul.f32 1.0, %v2398
        %v2400 = vrcp.pop %v2242
        %v2401 = vmul.f32 1.0, %v2400
        %v2402 = vrcp.pop %v2243
        %v2403 = vmul.f32 1.0, %v2402
        %v2404 = vrcp.pop %v2244
        %v2405 = vmul.f32 1.0, %v2404
        %v2406 = vrcp.pop %v2245
        %v2407 = vmul.f32 1.0, %v2406
        %v2408 = vrcp.pop %v2246
        %v2409 = vmul.f32 1.0, %v2408
        %v2410 = vrcp.pop %v2247
        %v2411 = vmul.f32 1.0, %v2410
        %v2412 = vrcp.pop %v2248
        %v2413 = vmul.f32 1.0, %v2412
        %v2414 = vrcp.pop %v2249
        %v2415 = vmul.f32 1.0, %v2414
        %v2416 = vrcp.pop %v2250
        %v2417 = vmul.f32 1.0, %v2416
        %v2418 = vrcp.pop %v2251
        %v2419 = vmul.f32 1.0, %v2418
        %v2420 = vrcp.pop %v2252
        %v2421 = vmul.f32 1.0, %v2420
        %v2422 = vrcp.pop %v2253
        %v2423 = vmul.f32 1.0, %v2422
        %v2424 = vrcp.pop %v2254
        %v2425 = vmul.f32 1.0, %v2424
        %v2426 = vrcp.pop %v2255
        %v2427 = vmul.f32 1.0, %v2426
        %v2428 = vrcp.pop %v2256
        %v2429 = vmul.f32 1.0, %v2428
        %v2430 = vrcp.pop %v2257
        %v2431 = vmul.f32 1.0, %v2430
        %v2432 = vrcp.pop %v2258
        %v2433 = vmul.f32 1.0, %v2432
        %v2434 = vrcp.pop %v2259
        %v2435 = vmul.f32 1.0, %v2434
        %v2436 = vrcp.pop %v2260
        %v2437 = vmul.f32 1.0, %v2436
        %v2438 = vrcp.pop %v2261
        %v2439 = vmul.f32 1.0, %v2438
        %v2440 = vrcp.pop %v2262
        %v2441 = vmul.f32 1.0, %v2440
        %v2442 = vrcp.pop %v2263
        %v2443 = vmul.f32 1.0, %v2442
        %v2444 = vrcp.pop %v2264
        %v2445 = vmul.f32 1.0, %v2444
        %v2446 = vrcp.pop %v2265
        %v2447 = vmul.f32 1.0, %v2446
        %v2448 = vrcp.pop %v2266
        %v2449 = vmul.f32 1.0, %v2448
        %v2450 = vrcp.pop %v2267
        %v2451 = vmul.f32 1.0, %v2450
        %v2452 = vrcp.pop %v2268
        %v2453 = vmul.f32 1.0, %v2452
        %v2454 = vrcp.pop %v2269
        %v2455 = vmul.f32 1.0, %v2454
        %v2456 = vrcp.pop %v2270
        %v2457 = vmul.f32 1.0, %v2456
        %v2458 = vrcp.pop %v2271
        %v2459 = vmul.f32 1.0, %v2458
        %v2460 = vrcp.pop %v2272
        %v2461 = vmul.f32 1.0, %v2460
        %v2462 = vrcp.pop %v2273
        %v2463 = vmul.f32 1.0, %v2462
        %v2464 = vrcp.pop %v2274
        %v2465 = vmul.f32 1.0, %v2464
        %v2466 = vrcp.pop %v2275
        %v2467 = vmul.f32 1.0, %v2466
        %v2468 = vrcp.pop %v2276
        %v2469 = vmul.f32 1.0, %v2468
        %v2470 = vrcp.pop %v2277
        %v2471 = vmul.f32 1.0, %v2470
        %v2472 = vrcp.pop %v2278
        %v2473 = vmul.f32 1.0, %v2472
        %v2474 = vrcp.pop %v2279
        %v2475 = vmul.f32 1.0, %v2474
        %v2476 = vrcp.pop %v2280
        %v2477 = vmul.f32 1.0, %v2476
        %v2478 = vrcp.pop %v2281
        %v2479 = vmul.f32 1.0, %v2478
        %v2480 = vrcp.pop %v2282
        %v2481 = vmul.f32 1.0, %v2480
        %v2482 = vrcp.pop %v2283
        %v2483 = vmul.f32 1.0, %v2482
        %v2484 = vrcp.pop %v2284
        %v2485 = vmul.f32 1.0, %v2484
        %v2486 = vrcp.pop %v2285
        %v2487 = vmul.f32 1.0, %v2486
        %v2488 = vrcp.pop %v2286
        %v2489 = vmul.f32 1.0, %v2488
        %v2490 = vrcp.pop %v2287
        %v2491 = vmul.f32 1.0, %v2490
        %v2492 = vrcp.pop %v2288
        %v2493 = vmul.f32 1.0, %v2492
        %v2494 = vrcp.pop %v2289
        %v2495 = vmul.f32 1.0, %v2494
        %v2496 = vrcp.pop %v2290
        %v2497 = vmul.f32 1.0, %v2496
        %v2498 = vrcp.pop %v2291
        %v2499 = vmul.f32 1.0, %v2498
        %v2500 = vrcp.pop %v2292
        %v2501 = vmul.f32 1.0, %v2500
        %v2502 = vrcp.pop %v2293
        %v2503 = vmul.f32 1.0, %v2502
        %v2504 = vrcp.pop %v2294
        %v2505 = vmul.f32 1.0, %v2504
        %v2506 = vrcp.pop %v2295
        %v2507 = vmul.f32 1.0, %v2506
        %v2508 = vrcp.pop %v2296
        %v2509 = vmul.f32 1.0, %v2508
        %v2510 = vrcp.pop %v2297
        %v2511 = vmul.f32 1.0, %v2510
        %v2512 = vrcp.pop %v2298
        %v2513 = vmul.f32 1.0, %v2512
        %v2514 = vrcp.pop %v2299
        %v2515 = vmul.f32 1.0, %v2514
        %v2516 = vrcp.pop %v2300
        %v2517 = vmul.f32 1.0, %v2516
        %v2518 = vrcp.pop %v2301
        %v2519 = vmul.f32 1.0, %v2518
        %v2520 = vrcp.pop %v2302
        %v2521 = vmul.f32 1.0, %v2520
        %v2522 = vrcp.pop %v2303
        %v2523 = vmul.f32 1.0, %v2522
        %v2524 = vrcp.pop %v2304
        %v2525 = vmul.f32 1.0, %v2524
        %v2526 = vrcp.pop %v2305
        %v2527 = vmul.f32 1.0, %v2526
        %v2528 = vrcp.pop %v2306
        %v2529 = vmul.f32 1.0, %v2528
        %v2530 = vrcp.pop %v2307
        %v2531 = vmul.f32 1.0, %v2530
        %v2532 = vrcp.pop %v2308
        %v2533 = vmul.f32 1.0, %v2532
        %v2534 = vrcp.pop %v2309
        %v2535 = vmul.f32 1.0, %v2534
        %v2536 = vrcp.pop %v2310
        %v2537 = vmul.f32 1.0, %v2536
        %v2538 = vrcp.pop %v2311
        %v2539 = vmul.f32 1.0, %v2538
        %v2540 = vrcp.pop %v2312
        %v2541 = vmul.f32 1.0, %v2540
        %v2542 = vrcp.pop %v2313
        %v2543 = vmul.f32 1.0, %v2542
        %v2544 = vrcp.pop %v2314
        %v2545 = vmul.f32 1.0, %v2544
        %v2546 = vrcp.pop %v2315
        %v2547 = vmul.f32 1.0, %v2546
        %v2548 = vrcp.pop %v2316
        %v2549 = vmul.f32 1.0, %v2548
        %v2550 = vrcp.pop %v2317
        %v2551 = vmul.f32 1.0, %v2550
        %v2552 = vrcp.pop %v2318
        %v2553 = vmul.f32 1.0, %v2552
        %v2554 = vrcp.pop %v2319
        %v2555 = vmul.f32 1.0, %v2554
        %v2556 = vrcp.pop %v2320
        %v2557 = vmul.f32 1.0, %v2556
        %v2558 = vrcp.pop %v2321
        %v2559 = vmul.f32 1.0, %v2558
        %v2560 = vrcp.pop %v2322
        %v2561 = vmul.f32 1.0, %v2560
        %v2562 = vrcp.pop %v2323
        %v2563 = vmul.f32 1.0, %v2562
        %v2564 = vrcp.pop %v2324
        %v2565 = vmul.f32 1.0, %v2564
        %v2566 = vrcp.pop %v2325
        %v2567 = vmul.f32 1.0, %v2566
        %v2568 = vrcp.pop %v2326
        %v2569 = vmul.f32 1.0, %v2568
        %v2570 = vrcp.pop %v2327
        %v2571 = vmul.f32 1.0, %v2570
        %v2572 = vrcp.pop %v2328
        %v2573 = vmul.f32 1.0, %v2572
        %v2574 = vrcp.pop %v2329
        %v2575 = vmul.f32 1.0, %v2574
        %v2576 = vrcp.pop %v2330
        %v2577 = vmul.f32 1.0, %v2576
        %v2578 = vrcp.pop %v2331
        %v2579 = vmul.f32 1.0, %v2578
        %v2580 = vrcp.pop %v2332
        %v2581 = vmul.f32 1.0, %v2580
        %v2582 = vrcp.pop %v2333
        %v2583 = vmul.f32 1.0, %v2582
        %v2584 = vrcp.pop %v2334
        %v2585 = vmul.f32 1.0, %v2584
        %v2586 = vrcp.pop %v2335
        %v2587 = vmul.f32 1.0, %v2586
        %v2588 = vrcp.pop %v2336
        %v2589 = vmul.f32 1.0, %v2588
        %v2590 = vrcp.pop %v2337
        %v2591 = vmul.f32 1.0, %v2590
        %v2592 = vrcp.pop %v2338
        %v2593 = vmul.f32 1.0, %v2592
        %v2594 = vrcp.pop %v2339
        %v2595 = vmul.f32 1.0, %v2594
        %v2596 = vmul.f32 %v2341, 255.0
        %v2597 = vmul.f32 %v2343, 255.0
        %v2598 = vmul.f32 %v2345, 255.0
        %v2599 = vmul.f32 %v2347, 255.0
        %v2600 = vmul.f32 %v2349, 255.0
        %v2601 = vmul.f32 %v2351, 255.0
        %v2602 = vmul.f32 %v2353, 255.0
        %v2603 = vmul.f32 %v2355, 255.0
        %v2604 = vmul.f32 %v2357, 255.0
        %v2605 = vmul.f32 %v2359, 255.0
        %v2606 = vmul.f32 %v2361, 255.0
        %v2607 = vmul.f32 %v2363, 255.0
        %v2608 = vmul.f32 %v2365, 255.0
        %v2609 = vmul.f32 %v2367, 255.0
        %v2610 = vmul.f32 %v2369, 255.0
        %v2611 = vmul.f32 %v2371, 255.0
        %v2612 = vmul.f32 %v2373, 255.0
        %v2613 = vmul.f32 %v2375, 255.0
        %v2614 = vmul.f32 %v2377, 255.0
        %v2615 = vmul.f32 %v2379, 255.0
        %v2616 = vmul.f32 %v2381, 255.0
        %v2617 = vmul.f32 %v2383, 255.0
        %v2618 = vmul.f32 %v2385, 255.0
        %v2619 = vmul.f32 %v2387, 255.0
        %v2620 = vmul.f32 %v2389, 255.0
        %v2621 = vmul.f32 %v2391, 255.0
        %v2622 = vmul.f32 %v2393, 255.0
        %v2623 = vmul.f32 %v2395, 255.0
        %v2624 = vmul.f32 %v2397, 255.0
        %v2625 = vmul.f32 %v2399, 255.0
        %v2626 = vmul.f32 %v2401, 255.0
        %v2627 = vmul.f32 %v2403, 255.0
        %v2628 = vmul.f32 %v2405, 255.0
        %v2629 = vmul.f32 %v2407, 255.0
        %v2630 = vmul.f32 %v2409, 255.0
        %v2631 = vmul.f32 %v2411, 255.0
        %v2632 = vmul.f32 %v2413, 255.0
        %v2633 = vmul.f32 %v2415, 255.0
        %v2634 = vmul.f32 %v2417, 255.0
        %v2635 = vmul.f32 %v2419, 255.0
        %v2636 = vmul.f32 %v2421, 255.0
        %v2637 = vmul.f32 %v2423, 255.0
        %v2638 = vmul.f32 %v2425, 255.0
        %v2639 = vmul.f32 %v2427, 255.0
        %v2640 = vmul.f32 %v2429, 255.0
        %v2641 = vmul.f32 %v2431, 255.0
        %v2642 = vmul.f32 %v2433, 255.0
        %v2643 = vmul.f32 %v2435, 255.0
        %v2644 = vmul.f32 %v2437, 255.0
        %v2645 = vmul.f32 %v2439, 255.0
        %v2646 = vmul.f32 %v2441, 255.0
        %v2647 = vmul.f32 %v2443, 255.0
        %v2648 = vmul.f32 %v2445, 255.0
        %v2649 = vmul.f32 %v2447, 255.0
        %v2650 = vmul.f32 %v2449, 255.0
        %v2651 = vmul.f32 %v2451, 255.0
        %v2652 = vmul.f32 %v2453, 255.0
        %v2653 = vmul.f32 %v2455, 255.0
        %v2654 = vmul.f32 %v2457, 255.0
        %v2655 = vmul.f32 %v2459, 255.0
        %v2656 = vmul.f32 %v2461, 255.0
        %v2657 = vmul.f32 %v2463, 255.0
        %v2658 = vmul.f32 %v2465, 255.0
        %v2659 = vmul.f32 %v2467, 255.0
        %v2660 = vmul.f32 %v2469, 255.0
        %v2661 = vmul.f32 %v2471, 255.0
        %v2662 = vmul.f32 %v2473, 255.0
        %v2663 = vmul.f32 %v2475, 255.0
        %v2664 = vmul.f32 %v2477, 255.0
        %v2665 = vmul.f32 %v2479, 255.0
        %v2666 = vmul.f32 %v2481, 255.0
        %v2667 = vmul.f32 %v2483, 255.0
        %v2668 = vmul.f32 %v2485, 255.0
        %v2669 = vmul.f32 %v2487, 255.0
        %v2670 = vmul.f32 %v2489, 255.0
        %v2671 = vmul.f32 %v2491, 255.0
        %v2672 = vmul.f32 %v2493, 255.0
        %v2673 = vmul.f32 %v2495, 255.0
        %v2674 = vmul.f32 %v2497, 255.0
        %v2675 = vmul.f32 %v2499, 255.0
        %v2676 = vmul.f32 %v2501, 255.0
        %v2677 = vmul.f32 %v2503, 255.0
        %v2678 = vmul.f32 %v2505, 255.0
        %v2679 = vmul.f32 %v2507, 255.0
        %v2680 = vmul.f32 %v2509, 255.0
        %v2681 = vmul.f32 %v2511, 255.0
        %v2682 = vmul.f32 %v2513, 255.0
        %v2683 = vmul.f32 %v2515, 255.0
        %v2684 = vmul.f32 %v2517, 255.0
        %v2685 = vmul.f32 %v2519, 255.0
        %v2686 = vmul.f32 %v2521, 255.0
        %v2687 = vmul.f32 %v2523, 255.0
        %v2688 = vmul.f32 %v2525, 255.0
        %v2689 = vmul.f32 %v2527, 255.0
        %v2690 = vmul.f32 %v2529, 255.0
        %v2691 = vmul.f32 %v2531, 255.0
        %v2692 = vmul.f32 %v2533, 255.0
        %v2693 = vmul.f32 %v2535, 255.0
        %v2694 = vmul.f32 %v2537, 255.0
        %v2695 = vmul.f32 %v2539, 255.0
        %v2696 = vmul.f32 %v2541, 255.0
        %v2697 = vmul.f32 %v2543, 255.0
        %v2698 = vmul.f32 %v2545, 255.0
        %v2699 = vmul.f32 %v2547, 255.0
        %v2700 = vmul.f32 %v2549, 255.0
        %v2701 = vmul.f32 %v2551, 255.0
        %v2702 = vmul.f32 %v2553, 255.0
        %v2703 = vmul.f32 %v2555, 255.0
        %v2704 = vmul.f32 %v2557, 255.0
        %v2705 = vmul.f32 %v2559, 255.0
        %v2706 = vmul.f32 %v2561, 255.0
        %v2707 = vmul.f32 %v2563, 255.0
        %v2708 = vmul.f32 %v2565, 255.0
        %v2709 = vmul.f32 %v2567, 255.0
        %v2710 = vmul.f32 %v2569, 255.0
        %v2711 = vmul.f32 %v2571, 255.0
        %v2712 = vmul.f32 %v2573, 255.0
        %v2713 = vmul.f32 %v2575, 255.0
        %v2714 = vmul.f32 %v2577, 255.0
        %v2715 = vmul.f32 %v2579, 255.0
        %v2716 = vmul.f32 %v2581, 255.0
        %v2717 = vmul.f32 %v2583, 255.0
        %v2718 = vmul.f32 %v2585, 255.0
        %v2719 = vmul.f32 %v2587, 255.0
        %v2720 = vmul.f32 %v2589, 255.0
        %v2721 = vmul.f32 %v2591, 255.0
        %v2722 = vmul.f32 %v2593, 255.0
        %v2723 = vmul.f32 %v2595, 255.0
        %2724 = vst [vmem:[%s346] sm:$0xff] %v2596
        %2725 = vst [vmem:[%s346 + $0x8] sm:$0xff] %v2597
        %2726 = vst [vmem:[%s346 + $0x10] sm:$0xff] %v2598
        %2727 = vst [vmem:[%s346 + $0x18] sm:$0xff] %v2599
        %2728 = vst [vmem:[%s346 + $0x20] sm:$0xff] %v2600
        %2729 = vst [vmem:[%s346 + $0x28] sm:$0xff] %v2601
        %2730 = vst [vmem:[%s346 + $0x30] sm:$0xff] %v2602
        %2731 = vst [vmem:[%s346 + $0x38] sm:$0xff] %v2603
        %2732 = vst [vmem:[%s346 + $0x40] sm:$0xff] %v2604
        %2733 = vst [vmem:[%s346 + $0x48] sm:$0xff] %v2605
        %2734 = vst [vmem:[%s346 + $0x50] sm:$0xff] %v2606
        %2735 = vst [vmem:[%s346 + $0x58] sm:$0xff] %v2607
        %2736 = vst [vmem:[%s346 + $0x60] sm:$0xff] %v2608
        %2737 = vst [vmem:[%s346 + $0x68] sm:$0xff] %v2609
        %2738 = vst [vmem:[%s346 + $0x70] sm:$0xff] %v2610
        %2739 = vst [vmem:[%s346 + $0x78] sm:$0xff] %v2611
        %2740 = vst [vmem:[%s346 + $0x80] sm:$0xff] %v2612
        %2741 = vst [vmem:[%s346 + $0x88] sm:$0xff] %v2613
        %2742 = vst [vmem:[%s346 + $0x90] sm:$0xff] %v2614
        %2743 = vst [vmem:[%s346 + $0x98] sm:$0xff] %v2615
        %2744 = vst [vmem:[%s346 + $0xa0] sm:$0xff] %v2616
        %2745 = vst [vmem:[%s346 + $0xa8] sm:$0xff] %v2617
        %2746 = vst [vmem:[%s346 + $0xb0] sm:$0xff] %v2618
        %2747 = vst [vmem:[%s346 + $0xb8] sm:$0xff] %v2619
        %2748 = vst [vmem:[%s346 + $0xc0] sm:$0xff] %v2620
        %2749 = vst [vmem:[%s346 + $0xc8] sm:$0xff] %v2621
        %2750 = vst [vmem:[%s346 + $0xd0] sm:$0xff] %v2622
        %2751 = vst [vmem:[%s346 + $0xd8] sm:$0xff] %v2623
        %2752 = vst [vmem:[%s346 + $0xe0] sm:$0xff] %v2624
        %2753 = vst [vmem:[%s346 + $0xe8] sm:$0xff] %v2625
        %2754 = vst [vmem:[%s346 + $0xf0] sm:$0xff] %v2626
        %2755 = vst [vmem:[%s346 + $0xf8] sm:$0xff] %v2627
        %2756 = vst [vmem:[%s346 + $0x100] sm:$0xff] %v2628
        %2757 = vst [vmem:[%s346 + $0x108] sm:$0xff] %v2629
        %2758 = vst [vmem:[%s346 + $0x110] sm:$0xff] %v2630
        %2759 = vst [vmem:[%s346 + $0x118] sm:$0xff] %v2631
        %2760 = vst [vmem:[%s346 + $0x120] sm:$0xff] %v2632
        %2761 = vst [vmem:[%s346 + $0x128] sm:$0xff] %v2633
        %2762 = vst [vmem:[%s346 + $0x130] sm:$0xff] %v2634
        %2763 = vst [vmem:[%s346 + $0x138] sm:$0xff] %v2635
        %2764 = vst [vmem:[%s346 + $0x140] sm:$0xff] %v2636
        %2765 = vst [vmem:[%s346 + $0x148] sm:$0xff] %v2637
        %2766 = vst [vmem:[%s346 + $0x150] sm:$0xff] %v2638
        %2767 = vst [vmem:[%s346 + $0x158] sm:$0xff] %v2639
        %2768 = vst [vmem:[%s346 + $0x160] sm:$0xff] %v2640
        %2769 = vst [vmem:[%s346 + $0x168] sm:$0xff] %v2641
        %2770 = vst [vmem:[%s346 + $0x170] sm:$0xff] %v2642
        %2771 = vst [vmem:[%s346 + $0x178] sm:$0xff] %v2643
        %2772 = vst [vmem:[%s346 + $0x180] sm:$0xff] %v2644
        %2773 = vst [vmem:[%s346 + $0x188] sm:$0xff] %v2645
        %2774 = vst [vmem:[%s346 + $0x190] sm:$0xff] %v2646
        %2775 = vst [vmem:[%s346 + $0x198] sm:$0xff] %v2647
        %2776 = vst [vmem:[%s346 + $0x1a0] sm:$0xff] %v2648
        %2777 = vst [vmem:[%s346 + $0x1a8] sm:$0xff] %v2649
        %2778 = vst [vmem:[%s346 + $0x1b0] sm:$0xff] %v2650
        %2779 = vst [vmem:[%s346 + $0x1b8] sm:$0xff] %v2651
        %2780 = vst [vmem:[%s346 + $0x1c0] sm:$0xff] %v2652
        %2781 = vst [vmem:[%s346 + $0x1c8] sm:$0xff] %v2653
        %2782 = vst [vmem:[%s346 + $0x1d0] sm:$0xff] %v2654
        %2783 = vst [vmem:[%s346 + $0x1d8] sm:$0xff] %v2655
        %2784 = vst [vmem:[%s346 + $0x1e0] sm:$0xff] %v2656
        %2785 = vst [vmem:[%s346 + $0x1e8] sm:$0xff] %v2657
        %2786 = vst [vmem:[%s346 + $0x1f0] sm:$0xff] %v2658
        %2787 = vst [vmem:[%s346 + $0x1f8] sm:$0xff] %v2659
        %2788 = vst [vmem:[%s346 + $0x200] sm:$0xff] %v2660
        %2789 = vst [vmem:[%s346 + $0x208] sm:$0xff] %v2661
        %2790 = vst [vmem:[%s346 + $0x210] sm:$0xff] %v2662
        %2791 = vst [vmem:[%s346 + $0x218] sm:$0xff] %v2663
        %2792 = vst [vmem:[%s346 + $0x220] sm:$0xff] %v2664
        %2793 = vst [vmem:[%s346 + $0x228] sm:$0xff] %v2665
        %2794 = vst [vmem:[%s346 + $0x230] sm:$0xff] %v2666
        %2795 = vst [vmem:[%s346 + $0x238] sm:$0xff] %v2667
        %2796 = vst [vmem:[%s346 + $0x240] sm:$0xff] %v2668
        %2797 = vst [vmem:[%s346 + $0x248] sm:$0xff] %v2669
        %2798 = vst [vmem:[%s346 + $0x250] sm:$0xff] %v2670
        %2799 = vst [vmem:[%s346 + $0x258] sm:$0xff] %v2671
        %2800 = vst [vmem:[%s346 + $0x260] sm:$0xff] %v2672
        %2801 = vst [vmem:[%s346 + $0x268] sm:$0xff] %v2673
        %2802 = vst [vmem:[%s346 + $0x270] sm:$0xff] %v2674
        %2803 = vst [vmem:[%s346 + $0x278] sm:$0xff] %v2675
        %2804 = vst [vmem:[%s346 + $0x280] sm:$0xff] %v2676
        %2805 = vst [vmem:[%s346 + $0x288] sm:$0xff] %v2677
        %2806 = vst [vmem:[%s346 + $0x290] sm:$0xff] %v2678
        %2807 = vst [vmem:[%s346 + $0x298] sm:$0xff] %v2679
        %2808 = vst [vmem:[%s346 + $0x2a0] sm:$0xff] %v2680
        %2809 = vst [vmem:[%s346 + $0x2a8] sm:$0xff] %v2681
        %2810 = vst [vmem:[%s346 + $0x2b0] sm:$0xff] %v2682
        %2811 = vst [vmem:[%s346 + $0x2b8] sm:$0xff] %v2683
        %2812 = vst [vmem:[%s346 + $0x2c0] sm:$0xff] %v2684
        %2813 = vst [vmem:[%s346 + $0x2c8] sm:$0xff] %v2685
        %2814 = vst [vmem:[%s346 + $0x2d0] sm:$0xff] %v2686
        %2815 = vst [vmem:[%s346 + $0x2d8] sm:$0xff] %v2687
        %2816 = vst [vmem:[%s346 + $0x2e0] sm:$0xff] %v2688
        %2817 = vst [vmem:[%s346 + $0x2e8] sm:$0xff] %v2689
        %2818 = vst [vmem:[%s346 + $0x2f0] sm:$0xff] %v2690
        %2819 = vst [vmem:[%s346 + $0x2f8] sm:$0xff] %v2691
        %2820 = vst [vmem:[%s346 + $0x300] sm:$0xff] %v2692
        %2821 = vst [vmem:[%s346 + $0x308] sm:$0xff] %v2693
        %2822 = vst [vmem:[%s346 + $0x310] sm:$0xff] %v2694
        %2823 = vst [vmem:[%s346 + $0x318] sm:$0xff] %v2695
        %2824 = vst [vmem:[%s346 + $0x320] sm:$0xff] %v2696
        %2825 = vst [vmem:[%s346 + $0x328] sm:$0xff] %v2697
        %2826 = vst [vmem:[%s346 + $0x330] sm:$0xff] %v2698
        %2827 = vst [vmem:[%s346 + $0x338] sm:$0xff] %v2699
        %2828 = vst [vmem:[%s346 + $0x340] sm:$0xff] %v2700
        %2829 = vst [vmem:[%s346 + $0x348] sm:$0xff] %v2701
        %2830 = vst [vmem:[%s346 + $0x350] sm:$0xff] %v2702
        %2831 = vst [vmem:[%s346 + $0x358] sm:$0xff] %v2703
        %2832 = vst [vmem:[%s346 + $0x360] sm:$0xff] %v2704
        %2833 = vst [vmem:[%s346 + $0x368] sm:$0xff] %v2705
        %2834 = vst [vmem:[%s346 + $0x370] sm:$0xff] %v2706
        %2835 = vst [vmem:[%s346 + $0x378] sm:$0xff] %v2707
        %2836 = vst [vmem:[%s346 + $0x380] sm:$0xff] %v2708
        %2837 = vst [vmem:[%s346 + $0x388] sm:$0xff] %v2709
        %2838 = vst [vmem:[%s346 + $0x390] sm:$0xff] %v2710
        %2839 = vst [vmem:[%s346 + $0x398] sm:$0xff] %v2711
        %2840 = vst [vmem:[%s346 + $0x3a0] sm:$0xff] %v2712
        %2841 = vst [vmem:[%s346 + $0x3a8] sm:$0xff] %v2713
        %2842 = vst [vmem:[%s346 + $0x3b0] sm:$0xff] %v2714
        %2843 = vst [vmem:[%s346 + $0x3b8] sm:$0xff] %v2715
        %2844 = vst [vmem:[%s346 + $0x3c0] sm:$0xff] %v2716
        %2845 = vst [vmem:[%s346 + $0x3c8] sm:$0xff] %v2717
        %2846 = vst [vmem:[%s346 + $0x3d0] sm:$0xff] %v2718
        %2847 = vst [vmem:[%s346 + $0x3d8] sm:$0xff] %v2719
        %2848 = vst [vmem:[%s346 + $0x3e0] sm:$0xff] %v2720
        %2849 = vst [vmem:[%s346 + $0x3e8] sm:$0xff] %v2721
        %2850 = vst [vmem:[%s346 + $0x3f0] sm:$0xff] %v2722
        %2851 = vst [vmem:[%s346 + $0x3f8] sm:$0xff] %v2723
        %s2852 = sand.u32 %s186, 1
        %s2853 = scalar_lea.sflag [#allocation4], %s2852
        %s2854 = sand.u32 %s186, 1
        %s2855 = smul.addr %s2854, 1024
        %s2856 = scalar_lea.vmem [#allocation10], %s2855
        // Predicated region
        $region65: #{tpu_custom_call.1} parent=47 // pred_check
          %p2857 = pneg %p196
        $region66: #{tpu_custom_call.1} parent=47 // pred_check_branch
          %2859 = sbr.rel (%p2857) target = $region68
        $region67: #{tpu_custom_call.1} parent=47 // pred_region
          %s2860 = smul.u32 64, %s26
          %s2861 = ssub.s32 80, %s2860
          %p2862 = scmp.lt.s32.totalorder %s2861, 64
          %s2863 = scalar_select %p2862, %s2861, 64
          %s2864 = smul.u32 128, %s2863
          %s2865 = smul.u32 %s2864, 2
          %s2867 = ssub.s32 16384, %s2865
          %2868 = vsyncadd %s2853, %s2867
          %p2869 = scmp.ne.s32.totalorder 0, %s2865
          %s2870 = smul.addr %s2860, 2
          %s2871 = smul.addr %s2870, 128
          %s2872 = scalar_lea.hbm %s7, %s2871
          %s2873 = smul.u32 16, %s2863
          %s2874 = sshll.u32 %s2856, 4
          %s2875 = int_to_ptr.vmem [resolvable:$true] %s2874
          %s2876 = sshll.u32 %s2873, 4
          %2880 = dma.vmem_to_hbm [thread:$0]  (%p2869), %s2875, %s2876, %s2872, %s2853, 256, 256, 16
        $region68: #{tpu_custom_call.1} parent=47 // pred_fallthru
          _
      $region48: #{tpu_custom_call.1} parent=5 // pred_fallthru
        _
      %p2881 = scmp.le.s32.totalorder 2, %s21
      // Predicated region
      $region69: #{tpu_custom_call.1} parent=5 // pred_check
        %p2882 = pneg %p2881
      $region70: #{tpu_custom_call.1} parent=5 // pred_check_branch
        %2884 = sbr.rel (%p2882) target = $region72
      $region71: #{tpu_custom_call.1} parent=5 // pred_region
        %s2885 = ssub.s32 %s21, 2
        // Predicated region
        $region73: #{tpu_custom_call.1} parent=71 // pred_check
          %p2886 = pneg %p202
        $region74: #{tpu_custom_call.1} parent=71 // pred_check_branch
          %2888 = sbr.rel (%p2886) target = $region76
        $region75: #{tpu_custom_call.1} parent=71 // pred_region
          %s2889 = sand.u32 %s187, 1
          %s2890 = scalar_lea.sflag [#allocation4], %s2889
          %s2891 = sand.u32 %s187, 1
          %s2892 = smul.addr %s2891, 1024
          %s2893 = scalar_lea.vmem [#allocation10], %s2892
          %2894 = dma.done %s2890, 16384
        $region76: #{tpu_custom_call.1} parent=71 // pred_fallthru
          _
      $region72: #{tpu_custom_call.1} parent=5 // pred_fallthru
        _
    $region6: #{tpu_custom_call.1} parent=1 // loop_footer
      %s25 = sadd.s32 1, %s21
    $region7: #{tpu_custom_call.1} parent=1 // loop_footer_branch
      %20 = sbr.rel target = $region3
    $region8: #{tpu_custom_call.1} parent=1 // loop_exit
      _
    %2895 = vsyncpa [#allocation3], 1
    %s2896 = scalar_lea.sflag [#allocation3], 1
    %2897 = vsyncpa %s2896, 1
    %2898 = vsyncpa [#allocation6], 1
    %2899 = vsyncpa [#allocation9], 1
    %2900 = vsyncpa [#allocation4], 1
    %s2901 = scalar_lea.sflag [#allocation4], 1
    %2902 = vsyncpa %s2901, 1

</llo_original>
